<compile_context>
chip_gen: v7x
topology: tpu7x:2x2x1
jax: 0.10.0
libtpu: 0.0.40
codegen_flags: <defaults>
</compile_context>

<pallas_src>
import functools
from math import ceil

import jax
import jax.numpy as jnp
from jax.experimental import pallas as pl
from jax.experimental.pallas import tpu as pltpu

_EPS = 1e-5  # nn.InstanceNorm3d default eps (affine=False, biased variance)

_CPARAMS = pltpu.CompilerParams(
    dimension_semantics=("parallel",),
    vmem_limit_bytes=32 * 1024 * 1024,
)


# ----------------------------- in-kernel helpers -----------------------------
def _gelu(x):
    # TODO(synk): nn.GELU() default is the exact erf formulation; using the
    # tanh approximation since erf lowering in Mosaic is not guaranteed.
    c = 0.7978845608028654  # sqrt(2/pi)
    return 0.5 * x * (1.0 + jnp.tanh(c * (x + 0.044715 * x * x * x)))


def _sigmoid(x):
    # exp and the approx reciprocal both issue on the EUP slot (VALU stays free).
    return pl.reciprocal(1.0 + jnp.exp(-x), approx=True)


def _inorm_lanes(v, inv_n):
    """Single-pass InstanceNorm over the lane axis of (rows, L).

    inv_n is 1/true_count; zero-padded lanes contribute nothing to either sum,
    so the statistics are exact for lane-padded slabs."""
    s1 = jnp.sum(v, axis=-1, keepdims=True) * inv_n
    s2 = jnp.sum(v * v, axis=-1, keepdims=True) * inv_n
    var = jnp.maximum(s2 - s1 * s1, 0.0)   # guard E[x^2]-mu^2 cancellation
    return (v - s1) * jax.lax.rsqrt(var + _EPS)


def _inorm_2d(v, inv_n):
    """Single-pass InstanceNorm over a dense (Sr, 128) spatial slab."""
    s1 = jnp.sum(v, keepdims=True) * inv_n
    s2 = jnp.sum(v * v, keepdims=True) * inv_n
    var = jnp.maximum(s2 - s1 * s1, 0.0)
    return (v - s1) * jax.lax.rsqrt(var + _EPS)


# ------------------------------- Pallas kernels -------------------------------
def _freq_gate_kernel(yrep_ref, wf_ref, bf_ref, gw_ref, o_ref, *, sc):
    """One batch element of the cropped-frequency path.

    yrep : (2*hid_c, SCp) cropped freq tensor with each of the 2*in_c channels
           repeated r = hid_c/in_c times (host-side) and zero lane-padded.
           IN of a repeated row equals the repeated IN row, so this lines the
           rows up with the grouped-conv outputs with no in-kernel gather.
    wf/bf: ElementWiseLayer W/B with the grouped 1x1 conv weight/bias, the
           real/imag range rescale and the min shift folded in host-side
           (exact algebra); zero on the padded lanes.
    gw   : (2*in_c, hid_c, 1) gate conv weight columns.  The gate conv bias is
           dropped: a per-channel constant is removed exactly by the IN that
           follows (also keeps the padded lanes at exactly zero).
    """
    yrep = yrep_ref[...]                               # (2*hid_c, SCp)
    ch2 = yrep.shape[0]
    hid = ch2 // 2
    ci2 = gw_ref.shape[0]
    r = ch2 // ci2
    inv_n = 1.0 / sc

    # gate: Conv3d(2*in_c -> hid_c, k=1) as a VPU broadcast-MAC (channel counts
    # are tiny; an MXU dot here would be >95% padding), then IN + sigmoid.
    g = gw_ref[0] * yrep[0:1, :]
    for k in range(1, ci2):
        g = g + gw_ref[k] * yrep[k * r:k * r + 1, :]
    g = _sigmoid(_inorm_lanes(g, inv_n))               # (hid, SCp)

    # frequency_layer: IN -> x*W + B (grouped conv / range / min folded in).
    f = _inorm_lanes(yrep, inv_n) * wf_ref[...] + bf_ref[...]

    # auto-filter applies to both halves (real / imag derived channels).
    o_ref[0:hid, :] = f[0:hid, :] * g
    o_ref[hid:ch2, :] = f[hid:ch2, :] * g


def _residual_head_kernel(x_ref, yi_ref, wsp_ref, bsp_ref, cw_ref, cb_ref,
                          o_ref, *, n_sp):
    """Fused tail for one batch element:
    grouped spatial 1x1 conv (per-channel scale) + residual add with the
    inverse-FFT branch -> IN -> GELU -> Conv3d(hid->out, k=1) -> IN -> GELU.

    Spatial volume is laid out as dense (Sr, 128) tiles; the big slabs stream
    in bf16 and are upcast here (stats / accumulation in f32)."""
    ci = x_ref.shape[0]
    hid = yi_ref.shape[0]
    oc = o_ref.shape[0]
    r = hid // ci
    inv_n = 1.0 / n_sp

    x = x_ref[...].astype(jnp.float32)                 # (ci, Sr, 128)
    z = []
    for m in range(hid):
        zm = (x[m // r] * wsp_ref[m] + bsp_ref[m]
              + yi_ref[m].astype(jnp.float32))         # (Sr, 128)
        z.append(_gelu(_inorm_2d(zm, inv_n)))

    # head conv as a VPU broadcast-MAC over the tiny hid_c dim (no MXU).
    for o in range(oc):
        acc = z[0] * cw_ref[o, 0]
        for m in range(1, hid):
            acc = acc + z[m] * cw_ref[o, m]
        acc = acc + cb_ref[o]                          # no-op under IN, kept for clarity
        o_ref[o] = _gelu(_inorm_2d(acc, inv_n)).astype(o_ref.dtype)


# ------------------------------ pallas_call wrappers ------------------------------
def freq_gate(yrep, wf, bf, gw_cols, *, sc):
    B, ch2, scp = yrep.shape
    ci2, hid, _ = gw_cols.shape
    flops = B * (2 * ci2 * hid * scp + 10 * (hid + ch2) * scp + 4 * ch2 * scp)
    trans = B * 2 * hid * scp
    bytes_ = 4 * (B * 2 * ch2 * scp + 2 * ch2 * scp + ci2 * hid)
    return pl.pallas_call(
        functools.partial(_freq_gate_kernel, sc=sc),
        out_shape=jax.ShapeDtypeStruct((B, ch2, scp), jnp.float32),
        grid=(B,),
        in_specs=[
            pl.BlockSpec((None, ch2, scp), lambda b: (b, 0, 0)),
            pl.BlockSpec((ch2, scp), lambda b: (0, 0)),
            pl.BlockSpec((ch2, scp), lambda b: (0, 0)),
            pl.BlockSpec((ci2, hid, 1), lambda b: (0, 0, 0)),
        ],
        out_specs=pl.BlockSpec((None, ch2, scp), lambda b: (b, 0, 0)),
        compiler_params=_CPARAMS,
        cost_estimate=pl.CostEstimate(flops=flops, transcendentals=trans,
                                      bytes_accessed=bytes_),
    )(yrep, wf, bf, gw_cols)


def residual_head(x_b, yi_b, w_sp, b_sp, cw, cb, *, n_sp):
    # TODO(synk): for large img sizes add a spatial grid axis with a two-pass
    # InstanceNorm (stats pass then normalize) so per-step blocks stay under the
    # v7x 64 MiB VMEM with tiles >= 512*128 lanes; at the demo shapes a full-S
    # block is only ~100 KiB so a single block per batch element is optimal.
    B, ci, sr, L = x_b.shape
    hid = yi_b.shape[1]
    oc = cw.shape[0]
    S = sr * L
    flops = B * S * (4 * hid + 20 * hid + 2 * oc * hid + 20 * oc)
    trans = B * S * (hid + oc)
    bytes_ = B * S * (2 * (ci + hid) + 4 * oc) + 4 * (2 * hid + oc * hid + oc)
    smem = pl.BlockSpec(memory_space=pltpu.MemorySpace.SMEM)
    return pl.pallas_call(
        functools.partial(_residual_head_kernel, n_sp=n_sp),
        out_shape=jax.ShapeDtypeStruct((B, oc, sr, L), jnp.float32),
        grid=(B,),
        in_specs=[
            pl.BlockSpec((None, ci, sr, L), lambda b: (b, 0, 0, 0)),
            pl.BlockSpec((None, hid, sr, L), lambda b: (b, 0, 0, 0)),
            smem, smem, smem, smem,
        ],
        out_specs=pl.BlockSpec((None, oc, sr, L), lambda b: (b, 0, 0, 0)),
        compiler_params=_CPARAMS,
        cost_estimate=pl.CostEstimate(flops=flops, transcendentals=trans,
                                      bytes_accessed=bytes_),
    )(x_b, yi_b, w_sp, b_sp, cw, cb)


# ---------------------------------- JAX glue ----------------------------------
def pad3d(x, target):
    """jnp equivalent of the reference pad3d (positive delta pads, negative crops)."""
    delta = [target[i] - x.shape[2 + i] for i in range(3)]
    idx = [slice(None), slice(None)]
    pads = [(0, 0), (0, 0)]
    for i in range(3):
        l = ceil(delta[i] / 2)
        r = delta[i] - l
        start = -l if l < 0 else 0
        stop = x.shape[2 + i] + r if r < 0 else x.shape[2 + i]
        idx.append(slice(start, stop))
        pads.append((max(l, 0), max(r, 0)))
    return jnp.pad(x[tuple(idx)], pads)


def rfftn_all_axes(x):
    # torch.fft.rfftn(x) transforms over ALL dims (incl. batch & channel).
    # XLA FFT is rank<=3, so decompose (FFT is separable, norm='backward').
    z = jnp.fft.rfft(x, axis=-1)
    z = jnp.fft.fftn(z, axes=(2, 3))
    z = jnp.fft.fft(z, axis=1)
    z = jnp.fft.fft(z, axis=0)
    return z


def fourier_block_forward(params, x, hid_c, out_c, crop_ratio=0.25):
    B, Ci, D, H, Wd = x.shape
    img = D
    S = D * H * Wd
    cropped = int(img * crop_ratio)
    cz = int(cropped / 2) + 1
    SC = cropped * cropped * cz
    SCp = ((SC + 127) // 128) * 128        # lane-dense padded spectral length
    r = hid_c // Ci                        # outputs per group in both grouped convs

    # ---- get_fft: FFT + fftshift + tensor-wide min/max norm (plain JAX) ----
    fft = jnp.fft.fftshift(rfftn_all_axes(x))
    real, imag = jnp.real(fft), jnp.imag(fft)
    rmn, rmx = jnp.min(real), jnp.max(real)
    imn, imx = jnp.min(imag), jnp.max(imag)
    real = (real - rmn) / (rmx - rmn)
    imag = (imag - imn) / (imx - imn)
    y = jnp.concatenate([real, imag], axis=1)          # (B, 2Ci, D, H, W//2+1)
    yc = pad3d(y, (cropped, cropped, cz)).reshape(B, 2 * Ci, SC)

    # ---- host-side exact folding (no one-hot matrices, no MXU) --------------
    # Each of the 2Ci channels repeated r times -> rows line up with the
    # 2*hid_c grouped-conv outputs; IN of a repeated row == repeated IN row.
    yrep = jnp.pad(jnp.repeat(yc, r, axis=1), ((0, 0), (0, 0), (0, SCp - SC)))
    rng = jnp.concatenate([jnp.full((hid_c,), rmx - rmn),
                           jnp.full((hid_c,), imx - imn)])
    mn = jnp.concatenate([jnp.full((hid_c,), rmn), jnp.full((hid_c,), imn)])
    scale = params["freq_w"] * rng                     # grouped conv weight * range
    wf = jnp.repeat(params["ew_w"], r, axis=0) * scale[:, None]
    bf = (jnp.repeat(params["ew_b"], r, axis=0) * scale[:, None]
          + (params["freq_b"] * rng + mn)[:, None])
    wf = jnp.pad(wf, ((0, 0), (0, SCp - SC)))
    bf = jnp.pad(bf, ((0, 0), (0, SCp - SC)))          # zero pad keeps padded lanes at 0
    gw_cols = params["gate_w"].T[:, :, None]           # (2Ci, hid_c, 1); gate bias is an
                                                       # exact no-op under the following IN

    # ---- gate + frequency_layer + recombination (Pallas) -------------------
    yfreq = freq_gate(yrep, wf, bf, gw_cols, sc=SC)[..., :SC]
    yfreq = yfreq.reshape(B, 2 * hid_c, cropped, cropped, cz)

    # ---- get_filtered_inverse_fft (plain JAX) ------------------------------
    padded = pad3d(yfreq, (img, img, int(img / 2) + 1))
    z = jax.lax.complex(padded[:, :hid_c], padded[:, hid_c:])
    z = jnp.fft.ifftshift(z)                           # all axes (torch default)
    y_ifft = jnp.fft.irfftn(z, s=(img, img, img), axes=(2, 3, 4))

    # ---- fused spatial grouped conv + residual + IN/GELU + head + IN/GELU --
    L = 128 if S % 128 == 0 else S
    Sr = S // L
    x_b = x.reshape(B, Ci, Sr, L).astype(jnp.bfloat16)
    yi_b = y_ifft.reshape(B, hid_c, Sr, L).astype(jnp.bfloat16)
    out = residual_head(x_b, yi_b, params["w_sp"], params["b_sp"],
                        params["head_w"], params["head_b"], n_sp=S)
    return out.reshape(B, out_c, D, H, Wd)


def init_params(key, in_c, hid_c, out_c, img_size, crop_ratio=0.25):
    cropped = int(img_size * crop_ratio)
    cz = int(cropped / 2) + 1
    SC = cropped * cropped * cz
    ks = jax.random.split(key, 6)
    n_el = 2 * in_c * SC
    return {
        # Conv3d(in_c, hid_c, k=1, groups=in_c): weight (hid_c,1,1,1,1)
        "w_sp": 0.5 * jax.random.normal(ks[0], (hid_c,), jnp.float32),
        "b_sp": 0.1 * jax.random.normal(ks[1], (hid_c,), jnp.float32),
        # ElementWiseLayer(2*in_c, cropped): W (1,2Ci,c,c,cz) xavier-ish, B zeros
        "ew_w": jax.random.normal(ks[2], (2 * in_c, SC), jnp.float32) * (2.0 / n_el) ** 0.5,
        "ew_b": jnp.zeros((2 * in_c, SC), jnp.float32),
        # gate Conv3d(2*in_c, hid_c, k=1) -- bias is an exact no-op (followed by IN)
        "gate_w": 0.5 * jax.random.normal(ks[3], (hid_c, 2 * in_c), jnp.float32),
        "gate_b": jnp.zeros((hid_c,), jnp.float32),
        # frequency Conv3d(2*in_c, 2*hid_c, k=1, groups=2*in_c)
        "freq_w": 0.5 * jax.random.normal(ks[4], (2 * hid_c,), jnp.float32),
        "freq_b": jnp.zeros((2 * hid_c,), jnp.float32),
        # FourierBlock head Conv3d(hid_c, out_c, k=1)
        "head_w": 0.5 * jax.random.normal(ks[5], (out_c, hid_c), jnp.float32),
        "head_b": jnp.zeros((out_c,), jnp.float32),
    }


if __name__ == "__main__":
    B, in_c, hid_c, out_c, img = 2, 2, 4, 2, 16
    key = jax.random.PRNGKey(0)
    kx, kp = jax.random.split(key)
    x = jax.random.normal(kx, (B, in_c, img, img, img), jnp.float32)
    params = init_params(kp, in_c, hid_c, out_c, img)

    fwd = jax.jit(functools.partial(fourier_block_forward, hid_c=hid_c, out_c=out_c))
    y = fwd(params, x)
    jax.block_until_ready(y)

    assert y.shape == (B, out_c, img, img, img)
    assert bool(jnp.all(jnp.isfinite(y)))
    print("KERNEL_OK")
</pallas_src>

<mosaic_0001>
module attributes {stable_mosaic.version = 11 : i64} {
  func.func @_freq_gate_kernel(%arg0: i32, %arg1: memref<1x8x128xf32, #tpu.memory_space<vmem>>, %arg2: memref<8x128xf32, #tpu.memory_space<vmem>>, %arg3: memref<8x128xf32, #tpu.memory_space<vmem>>, %arg4: memref<4x4x1xf32, #tpu.memory_space<vmem>>, %arg5: memref<1x8x128xf32, #tpu.memory_space<vmem>>) attributes {dimension_semantics = [#tpu.dimension_semantics<parallel>], iteration_bounds = array<i64: 2>, scalar_prefetch = 0 : i64, scratch_operands = 0 : i64, tpu.core_type = #tpu.core_type<tc>, window_params = [{transform_indices = @transform_0, window_bounds = array<i64: 1, 8, 128>}, {pipeline_mode = #tpu.pipeline_mode<synchronous>, transform_indices = @transform_1, window_bounds = array<i64: 8, 128>}, {pipeline_mode = #tpu.pipeline_mode<synchronous>, transform_indices = @transform_2, window_bounds = array<i64: 8, 128>}, {pipeline_mode = #tpu.pipeline_mode<synchronous>, transform_indices = @transform_3, window_bounds = array<i64: 4, 4, 1>}, {transform_indices = @transform_4, window_bounds = array<i64: 1, 8, 128>}]} {
    %c0 = arith.constant 0 : index
    %c0_0 = arith.constant 0 : index
    %c0_1 = arith.constant 0 : index
    %0 = vector.load %arg1[%c0, %c0_0, %c0_1] : memref<1x8x128xf32, #tpu.memory_space<vmem>>, vector<1x8x128xf32>
    %1 = vector.shape_cast %0 : vector<1x8x128xf32> to vector<8x128xf32>
    %c0_2 = arith.constant 0 : index
    %c0_3 = arith.constant 0 : index
    %c0_4 = arith.constant 0 : index
    %2 = vector.load %arg4[%c0_2, %c0_3, %c0_4] : memref<4x4x1xf32, #tpu.memory_space<vmem>>, vector<1x4x1xf32>
    %3 = vector.shape_cast %2 : vector<1x4x1xf32> to vector<4x1xf32>
    %4 = vector.extract_strided_slice %1 {offsets = [0, 0], sizes = [1, 128], strides = [1, 1]} : vector<8x128xf32> to vector<1x128xf32>
    %5 = vector.broadcast %3 : vector<4x1xf32> to vector<4x128xf32>
    %6 = vector.broadcast %4 : vector<1x128xf32> to vector<4x128xf32>
    %7 = arith.mulf %5, %6 : vector<4x128xf32>
    %c1 = arith.constant 1 : index
    %c0_5 = arith.constant 0 : index
    %c0_6 = arith.constant 0 : index
    %8 = vector.load %arg4[%c1, %c0_5, %c0_6] : memref<4x4x1xf32, #tpu.memory_space<vmem>>, vector<1x4x1xf32>
    %9 = vector.shape_cast %8 : vector<1x4x1xf32> to vector<4x1xf32>
    %10 = vector.extract_strided_slice %1 {offsets = [2, 0], sizes = [1, 128], strides = [1, 1]} : vector<8x128xf32> to vector<1x128xf32>
    %11 = vector.broadcast %9 : vector<4x1xf32> to vector<4x128xf32>
    %12 = vector.broadcast %10 : vector<1x128xf32> to vector<4x128xf32>
    %13 = arith.mulf %11, %12 : vector<4x128xf32>
    %14 = arith.addf %7, %13 : vector<4x128xf32>
    %c2 = arith.constant 2 : index
    %c0_7 = arith.constant 0 : index
    %c0_8 = arith.constant 0 : index
    %15 = vector.load %arg4[%c2, %c0_7, %c0_8] : memref<4x4x1xf32, #tpu.memory_space<vmem>>, vector<1x4x1xf32>
    %16 = vector.shape_cast %15 : vector<1x4x1xf32> to vector<4x1xf32>
    %17 = vector.extract_strided_slice %1 {offsets = [4, 0], sizes = [1, 128], strides = [1, 1]} : vector<8x128xf32> to vector<1x128xf32>
    %18 = vector.broadcast %16 : vector<4x1xf32> to vector<4x128xf32>
    %19 = vector.broadcast %17 : vector<1x128xf32> to vector<4x128xf32>
    %20 = arith.mulf %18, %19 : vector<4x128xf32>
    %21 = arith.addf %14, %20 : vector<4x128xf32>
    %c3 = arith.constant 3 : index
    %c0_9 = arith.constant 0 : index
    %c0_10 = arith.constant 0 : index
    %22 = vector.load %arg4[%c3, %c0_9, %c0_10] : memref<4x4x1xf32, #tpu.memory_space<vmem>>, vector<1x4x1xf32>
    %23 = vector.shape_cast %22 : vector<1x4x1xf32> to vector<4x1xf32>
    %24 = vector.extract_strided_slice %1 {offsets = [6, 0], sizes = [1, 128], strides = [1, 1]} : vector<8x128xf32> to vector<1x128xf32>
    %25 = vector.broadcast %23 : vector<4x1xf32> to vector<4x128xf32>
    %26 = vector.broadcast %24 : vector<1x128xf32> to vector<4x128xf32>
    %27 = arith.mulf %25, %26 : vector<4x128xf32>
    %28 = arith.addf %21, %27 : vector<4x128xf32>
    %cst = arith.constant dense<0.000000e+00> : vector<4xf32>
    %29 = vector.multi_reduction <add>, %28, %cst [1] : vector<4x128xf32> to vector<4xf32>
    %30 = vector.shape_cast %29 : vector<4xf32> to vector<4x1xf32>
    %cst_11 = arith.constant 0.020833334 : f32
    %31 = vector.broadcast %cst_11 : f32 to vector<4x1xf32>
    %32 = arith.mulf %30, %31 : vector<4x1xf32>
    %33 = arith.mulf %28, %28 : vector<4x128xf32>
    %cst_12 = arith.constant dense<0.000000e+00> : vector<4xf32>
    %34 = vector.multi_reduction <add>, %33, %cst_12 [1] : vector<4x128xf32> to vector<4xf32>
    %35 = vector.shape_cast %34 : vector<4xf32> to vector<4x1xf32>
    %cst_13 = arith.constant 0.020833334 : f32
    %36 = vector.broadcast %cst_13 : f32 to vector<4x1xf32>
    %37 = arith.mulf %35, %36 : vector<4x1xf32>
    %38 = arith.mulf %32, %32 : vector<4x1xf32>
    %39 = arith.subf %37, %38 : vector<4x1xf32>
    %cst_14 = arith.constant 0.000000e+00 : f32
    %40 = vector.broadcast %cst_14 : f32 to vector<4x1xf32>
    %41 = arith.maximumf %39, %40 : vector<4x1xf32>
    %42 = vector.broadcast %32 : vector<4x1xf32> to vector<4x128xf32>
    %43 = arith.subf %28, %42 : vector<4x128xf32>
    %cst_15 = arith.constant 9.99999974E-6 : f32
    %44 = vector.broadcast %cst_15 : f32 to vector<4x1xf32>
    %45 = arith.addf %41, %44 : vector<4x1xf32>
    %46 = math.rsqrt %45 : vector<4x1xf32>
    %47 = vector.broadcast %46 : vector<4x1xf32> to vector<4x128xf32>
    %48 = arith.mulf %43, %47 : vector<4x128xf32>
    %cst_16 = arith.constant 0.000000e+00 : f32
    %49 = vector.broadcast %cst_16 : f32 to vector<4x128xf32>
    %50 = arith.subf %49, %48 : vector<4x128xf32>
    %51 = math.exp %50 : vector<4x128xf32>
    %cst_17 = arith.constant 1.000000e+00 : f32
    %52 = vector.broadcast %cst_17 : f32 to vector<4x128xf32>
    %53 = arith.addf %52, %51 : vector<4x128xf32>
    %54 = tpu.reciprocal %53 {approx = true} : vector<4x128xf32> -> vector<4x128xf32>
    %cst_18 = arith.constant dense<0.000000e+00> : vector<8xf32>
    %55 = vector.multi_reduction <add>, %1, %cst_18 [1] : vector<8x128xf32> to vector<8xf32>
    %56 = vector.shape_cast %55 : vector<8xf32> to vector<8x1xf32>
    %cst_19 = arith.constant 0.020833334 : f32
    %57 = vector.broadcast %cst_19 : f32 to vector<8x1xf32>
    %58 = arith.mulf %56, %57 : vector<8x1xf32>
    %59 = arith.mulf %1, %1 : vector<8x128xf32>
    %cst_20 = arith.constant dense<0.000000e+00> : vector<8xf32>
    %60 = vector.multi_reduction <add>, %59, %cst_20 [1] : vector<8x128xf32> to vector<8xf32>
    %61 = vector.shape_cast %60 : vector<8xf32> to vector<8x1xf32>
    %cst_21 = arith.constant 0.020833334 : f32
    %62 = vector.broadcast %cst_21 : f32 to vector<8x1xf32>
    %63 = arith.mulf %61, %62 : vector<8x1xf32>
    %64 = arith.mulf %58, %58 : vector<8x1xf32>
    %65 = arith.subf %63, %64 : vector<8x1xf32>
    %cst_22 = arith.constant 0.000000e+00 : f32
    %66 = vector.broadcast %cst_22 : f32 to vector<8x1xf32>
    %67 = arith.maximumf %65, %66 : vector<8x1xf32>
    %68 = vector.broadcast %58 : vector<8x1xf32> to vector<8x128xf32>
    %69 = arith.subf %1, %68 : vector<8x128xf32>
    %cst_23 = arith.constant 9.99999974E-6 : f32
    %70 = vector.broadcast %cst_23 : f32 to vector<8x1xf32>
    %71 = arith.addf %67, %70 : vector<8x1xf32>
    %72 = math.rsqrt %71 : vector<8x1xf32>
    %73 = vector.broadcast %72 : vector<8x1xf32> to vector<8x128xf32>
    %74 = arith.mulf %69, %73 : vector<8x128xf32>
    %c0_24 = arith.constant 0 : index
    %c0_25 = arith.constant 0 : index
    %75 = vector.load %arg2[%c0_24, %c0_25] : memref<8x128xf32, #tpu.memory_space<vmem>>, vector<8x128xf32>
    %76 = arith.mulf %74, %75 : vector<8x128xf32>
    %c0_26 = arith.constant 0 : index
    %c0_27 = arith.constant 0 : index
    %77 = vector.load %arg3[%c0_26, %c0_27] : memref<8x128xf32, #tpu.memory_space<vmem>>, vector<8x128xf32>
    %78 = arith.addf %76, %77 : vector<8x128xf32>
    %79 = vector.extract_strided_slice %78 {offsets = [0, 0], sizes = [4, 128], strides = [1, 1]} : vector<8x128xf32> to vector<4x128xf32>
    %80 = arith.mulf %79, %54 : vector<4x128xf32>
    %c0_28 = arith.constant 0 : index
    %c0_29 = arith.constant 0 : index
    %c0_30 = arith.constant 0 : index
    %81 = vector.load %arg5[%c0_28, %c0_29, %c0_30] : memref<1x8x128xf32, #tpu.memory_space<vmem>>, vector<1x4x128xf32>
    %82 = vector.shape_cast %81 : vector<1x4x128xf32> to vector<4x128xf32>
    %83 = vector.shape_cast %80 : vector<4x128xf32> to vector<1x4x128xf32>
    tpu.vector_store %arg5[%c0_28, %c0_29, %c0_30], %83 {strides = array<i32>} : memref<1x8x128xf32, #tpu.memory_space<vmem>>, vector<1x4x128xf32>,
    %84 = vector.extract_strided_slice %78 {offsets = [4, 0], sizes = [4, 128], strides = [1, 1]} : vector<8x128xf32> to vector<4x128xf32>
    %85 = arith.mulf %84, %54 : vector<4x128xf32>
    %c0_31 = arith.constant 0 : index
    %c4 = arith.constant 4 : index
    %c0_32 = arith.constant 0 : index
    %86 = vector.load %arg5[%c0_31, %c4, %c0_32] : memref<1x8x128xf32, #tpu.memory_space<vmem>>, vector<1x4x128xf32>
    %87 = vector.shape_cast %86 : vector<1x4x128xf32> to vector<4x128xf32>
    %88 = vector.shape_cast %85 : vector<4x128xf32> to vector<1x4x128xf32>
    tpu.vector_store %arg5[%c0_31, %c4, %c0_32], %88 {strides = array<i32>} : memref<1x8x128xf32, #tpu.memory_space<vmem>>, vector<1x4x128xf32>,
    return
  }
  func.func @transform_0(%arg0: i32) -> (i32, i32, i32) {
    %c0_i32 = arith.constant 0 : i32
    %c0_i32_0 = arith.constant 0 : i32
    %c0_i32_1 = arith.constant 0 : i32
    return %arg0, %c0_i32, %c0_i32_0 : i32, i32, i32
  }
  func.func @transform_1(%arg0: i32) -> (i32, i32) {
    %c0_i32 = arith.constant 0 : i32
    %c0_i32_0 = arith.constant 0 : i32
    %c0_i32_1 = arith.constant 0 : i32
    return %c0_i32, %c0_i32_0 : i32, i32
  }
  func.func @transform_2(%arg0: i32) -> (i32, i32) {
    %c0_i32 = arith.constant 0 : i32
    %c0_i32_0 = arith.constant 0 : i32
    %c0_i32_1 = arith.constant 0 : i32
    return %c0_i32, %c0_i32_0 : i32, i32
  }
  func.func @transform_3(%arg0: i32) -> (i32, i32, i32) {
    %c0_i32 = arith.constant 0 : i32
    %c0_i32_0 = arith.constant 0 : i32
    %c0_i32_1 = arith.constant 0 : i32
    %c0_i32_2 = arith.constant 0 : i32
    return %c0_i32, %c0_i32_0, %c0_i32_1 : i32, i32, i32
  }
  func.func @transform_4(%arg0: i32) -> (i32, i32, i32) {
    %c0_i32 = arith.constant 0 : i32
    %c0_i32_0 = arith.constant 0 : i32
    %c0_i32_1 = arith.constant 0 : i32
    return %arg0, %c0_i32, %c0_i32_0 : i32, i32, i32
  }
}

module attributes {stable_mosaic.version = 11 : i64} {
  func.func @_residual_head_kernel(%arg0: i32, %arg1: memref<1x2x32x128xbf16, #tpu.memory_space<vmem>>, %arg2: memref<1x4x32x128xbf16, #tpu.memory_space<vmem>>, %arg3: memref<4xf32, #tpu.memory_space<smem>>, %arg4: memref<4xf32, #tpu.memory_space<smem>>, %arg5: memref<2x4xf32, #tpu.memory_space<smem>>, %arg6: memref<2xf32, #tpu.memory_space<smem>>, %arg7: memref<1x2x32x128xf32, #tpu.memory_space<vmem>>) attributes {dimension_semantics = [#tpu.dimension_semantics<parallel>], iteration_bounds = array<i64: 2>, scalar_prefetch = 0 : i64, scratch_operands = 0 : i64, tpu.core_type = #tpu.core_type<tc>, window_params = [{transform_indices = @transform_0, window_bounds = array<i64: 1, 2, 32, 128>}, {transform_indices = @transform_1, window_bounds = array<i64: 1, 4, 32, 128>}, {transform_indices = @transform_2, window_bounds = array<i64: 4>}, {transform_indices = @transform_3, window_bounds = array<i64: 4>}, {transform_indices = @transform_4, window_bounds = array<i64: 2, 4>}, {transform_indices = @transform_5, window_bounds = array<i64: 2>}, {transform_indices = @transform_6, window_bounds = array<i64: 1, 2, 32, 128>}]} {
    %c0 = arith.constant 0 : index
    %c0_0 = arith.constant 0 : index
    %c0_1 = arith.constant 0 : index
    %c0_2 = arith.constant 0 : index
    %0 = vector.load %arg1[%c0, %c0_0, %c0_1, %c0_2] : memref<1x2x32x128xbf16, #tpu.memory_space<vmem>>, vector<1x2x32x128xbf16>
    %1 = vector.shape_cast %0 : vector<1x2x32x128xbf16> to vector<2x32x128xbf16>
    %2 = arith.extf %1 : vector<2x32x128xbf16> to vector<2x32x128xf32>
    %3 = vector.extract_strided_slice %2 {offsets = [0, 0, 0], sizes = [1, 32, 128], strides = [1, 1, 1]} : vector<2x32x128xf32> to vector<1x32x128xf32>
    %4 = vector.shape_cast %3 : vector<1x32x128xf32> to vector<32x128xf32>
    %c0_3 = arith.constant 0 : index
    %5 = memref.load %arg3[%c0_3] : memref<4xf32, #tpu.memory_space<smem>>
    %6 = vector.broadcast %5 : f32 to vector<32x128xf32>
    %7 = arith.mulf %4, %6 : vector<32x128xf32>
    %c0_4 = arith.constant 0 : index
    %8 = memref.load %arg4[%c0_4] : memref<4xf32, #tpu.memory_space<smem>>
    %9 = vector.broadcast %8 : f32 to vector<32x128xf32>
    %10 = arith.addf %7, %9 : vector<32x128xf32>
    %c0_5 = arith.constant 0 : index
    %c0_6 = arith.constant 0 : index
    %c0_7 = arith.constant 0 : index
    %c0_8 = arith.constant 0 : index
    %11 = vector.load %arg2[%c0_5, %c0_6, %c0_7, %c0_8] : memref<1x4x32x128xbf16, #tpu.memory_space<vmem>>, vector<1x1x32x128xbf16>
    %12 = vector.shape_cast %11 : vector<1x1x32x128xbf16> to vector<32x128xbf16>
    %13 = arith.extf %12 : vector<32x128xbf16> to vector<32x128xf32>
    %14 = arith.addf %10, %13 : vector<32x128xf32>
    %15 = vector.shape_cast %14 : vector<32x128xf32> to vector<1x32x128xf32>
    %cst = arith.constant dense<0.000000e+00> : vector<1xf32>
    %16 = vector.multi_reduction <add>, %15, %cst [1, 2] : vector<1x32x128xf32> to vector<1xf32>
    %17 = vector.shape_cast %16 : vector<1xf32> to vector<1x1x1xf32>
    %18 = vector.extract %17[0, 0, 0] : f32 from vector<1x1x1xf32>
    %19 = vector.broadcast %18 : f32 to vector<1x1xf32>
    %cst_9 = arith.constant 2.44140625E-4 : f32
    %20 = vector.broadcast %cst_9 : f32 to vector<1x1xf32>
    %21 = arith.mulf %19, %20 : vector<1x1xf32>
    %22 = arith.mulf %14, %14 : vector<32x128xf32>
    %23 = vector.shape_cast %22 : vector<32x128xf32> to vector<1x32x128xf32>
    %cst_10 = arith.constant dense<0.000000e+00> : vector<1xf32>
    %24 = vector.multi_reduction <add>, %23, %cst_10 [1, 2] : vector<1x32x128xf32> to vector<1xf32>
    %25 = vector.shape_cast %24 : vector<1xf32> to vector<1x1x1xf32>
    %26 = vector.extract %25[0, 0, 0] : f32 from vector<1x1x1xf32>
    %27 = vector.broadcast %26 : f32 to vector<1x1xf32>
    %cst_11 = arith.constant 2.44140625E-4 : f32
    %28 = vector.broadcast %cst_11 : f32 to vector<1x1xf32>
    %29 = arith.mulf %27, %28 : vector<1x1xf32>
    %30 = arith.mulf %21, %21 : vector<1x1xf32>
    %31 = arith.subf %29, %30 : vector<1x1xf32>
    %cst_12 = arith.constant 0.000000e+00 : f32
    %32 = vector.broadcast %cst_12 : f32 to vector<1x1xf32>
    %33 = arith.maximumf %31, %32 : vector<1x1xf32>
    %34 = vector.broadcast %21 : vector<1x1xf32> to vector<32x128xf32>
    %35 = arith.subf %14, %34 : vector<32x128xf32>
    %cst_13 = arith.constant 9.99999974E-6 : f32
    %36 = vector.broadcast %cst_13 : f32 to vector<1x1xf32>
    %37 = arith.addf %33, %36 : vector<1x1xf32>
    %38 = math.rsqrt %37 : vector<1x1xf32>
    %39 = vector.broadcast %38 : vector<1x1xf32> to vector<32x128xf32>
    %40 = arith.mulf %35, %39 : vector<32x128xf32>
    %cst_14 = arith.constant 5.000000e-01 : f32
    %41 = vector.broadcast %cst_14 : f32 to vector<32x128xf32>
    %42 = arith.mulf %41, %40 : vector<32x128xf32>
    %cst_15 = arith.constant 4.471500e-02 : f32
    %43 = vector.broadcast %cst_15 : f32 to vector<32x128xf32>
    %44 = arith.mulf %43, %40 : vector<32x128xf32>
    %45 = arith.mulf %44, %40 : vector<32x128xf32>
    %46 = arith.mulf %45, %40 : vector<32x128xf32>
    %47 = arith.addf %40, %46 : vector<32x128xf32>
    %cst_16 = arith.constant 0.797884583 : f32
    %48 = vector.broadcast %cst_16 : f32 to vector<32x128xf32>
    %49 = arith.mulf %48, %47 : vector<32x128xf32>
    %50 = math.tanh %49 : vector<32x128xf32>
    %cst_17 = arith.constant 1.000000e+00 : f32
    %51 = vector.broadcast %cst_17 : f32 to vector<32x128xf32>
    %52 = arith.addf %51, %50 : vector<32x128xf32>
    %53 = arith.mulf %42, %52 : vector<32x128xf32>
    %54 = vector.extract_strided_slice %2 {offsets = [0, 0, 0], sizes = [1, 32, 128], strides = [1, 1, 1]} : vector<2x32x128xf32> to vector<1x32x128xf32>
    %55 = vector.shape_cast %54 : vector<1x32x128xf32> to vector<32x128xf32>
    %c1 = arith.constant 1 : index
    %56 = memref.load %arg3[%c1] : memref<4xf32, #tpu.memory_space<smem>>
    %57 = vector.broadcast %56 : f32 to vector<32x128xf32>
    %58 = arith.mulf %55, %57 : vector<32x128xf32>
    %c1_18 = arith.constant 1 : index
    %59 = memref.load %arg4[%c1_18] : memref<4xf32, #tpu.memory_space<smem>>
    %60 = vector.broadcast %59 : f32 to vector<32x128xf32>
    %61 = arith.addf %58, %60 : vector<32x128xf32>
    %c0_19 = arith.constant 0 : index
    %c1_20 = arith.constant 1 : index
    %c0_21 = arith.constant 0 : index
    %c0_22 = arith.constant 0 : index
    %62 = vector.load %arg2[%c0_19, %c1_20, %c0_21, %c0_22] : memref<1x4x32x128xbf16, #tpu.memory_space<vmem>>, vector<1x1x32x128xbf16>
    %63 = vector.shape_cast %62 : vector<1x1x32x128xbf16> to vector<32x128xbf16>
    %64 = arith.extf %63 : vector<32x128xbf16> to vector<32x128xf32>
    %65 = arith.addf %61, %64 : vector<32x128xf32>
    %66 = vector.shape_cast %65 : vector<32x128xf32> to vector<1x32x128xf32>
    %cst_23 = arith.constant dense<0.000000e+00> : vector<1xf32>
    %67 = vector.multi_reduction <add>, %66, %cst_23 [1, 2] : vector<1x32x128xf32> to vector<1xf32>
    %68 = vector.shape_cast %67 : vector<1xf32> to vector<1x1x1xf32>
    %69 = vector.extract %68[0, 0, 0] : f32 from vector<1x1x1xf32>
    %70 = vector.broadcast %69 : f32 to vector<1x1xf32>
    %cst_24 = arith.constant 2.44140625E-4 : f32
    %71 = vector.broadcast %cst_24 : f32 to vector<1x1xf32>
    %72 = arith.mulf %70, %71 : vector<1x1xf32>
    %73 = arith.mulf %65, %65 : vector<32x128xf32>
    %74 = vector.shape_cast %73 : vector<32x128xf32> to vector<1x32x128xf32>
    %cst_25 = arith.constant dense<0.000000e+00> : vector<1xf32>
    %75 = vector.multi_reduction <add>, %74, %cst_25 [1, 2] : vector<1x32x128xf32> to vector<1xf32>
    %76 = vector.shape_cast %75 : vector<1xf32> to vector<1x1x1xf32>
    %77 = vector.extract %76[0, 0, 0] : f32 from vector<1x1x1xf32>
    %78 = vector.broadcast %77 : f32 to vector<1x1xf32>
    %cst_26 = arith.constant 2.44140625E-4 : f32
    %79 = vector.broadcast %cst_26 : f32 to vector<1x1xf32>
    %80 = arith.mulf %78, %79 : vector<1x1xf32>
    %81 = arith.mulf %72, %72 : vector<1x1xf32>
    %82 = arith.subf %80, %81 : vector<1x1xf32>
    %cst_27 = arith.constant 0.000000e+00 : f32
    %83 = vector.broadcast %cst_27 : f32 to vector<1x1xf32>
    %84 = arith.maximumf %82, %83 : vector<1x1xf32>
    %85 = vector.broadcast %72 : vector<1x1xf32> to vector<32x128xf32>
    %86 = arith.subf %65, %85 : vector<32x128xf32>
    %cst_28 = arith.constant 9.99999974E-6 : f32
    %87 = vector.broadcast %cst_28 : f32 to vector<1x1xf32>
    %88 = arith.addf %84, %87 : vector<1x1xf32>
    %89 = math.rsqrt %88 : vector<1x1xf32>
    %90 = vector.broadcast %89 : vector<1x1xf32> to vector<32x128xf32>
    %91 = arith.mulf %86, %90 : vector<32x128xf32>
    %cst_29 = arith.constant 5.000000e-01 : f32
    %92 = vector.broadcast %cst_29 : f32 to vector<32x128xf32>
    %93 = arith.mulf %92, %91 : vector<32x128xf32>
    %cst_30 = arith.constant 4.471500e-02 : f32
    %94 = vector.broadcast %cst_30 : f32 to vector<32x128xf32>
    %95 = arith.mulf %94, %91 : vector<32x128xf32>
    %96 = arith.mulf %95, %91 : vector<32x128xf32>
    %97 = arith.mulf %96, %91 : vector<32x128xf32>
    %98 = arith.addf %91, %97 : vector<32x128xf32>
    %cst_31 = arith.constant 0.797884583 : f32
    %99 = vector.broadcast %cst_31 : f32 to vector<32x128xf32>
    %100 = arith.mulf %99, %98 : vector<32x128xf32>
    %101 = math.tanh %100 : vector<32x128xf32>
    %cst_32 = arith.constant 1.000000e+00 : f32
    %102 = vector.broadcast %cst_32 : f32 to vector<32x128xf32>
    %103 = arith.addf %102, %101 : vector<32x128xf32>
    %104 = arith.mulf %93, %103 : vector<32x128xf32>
    %105 = vector.extract_strided_slice %2 {offsets = [1, 0, 0], sizes = [1, 32, 128], strides = [1, 1, 1]} : vector<2x32x128xf32> to vector<1x32x128xf32>
    %106 = vector.shape_cast %105 : vector<1x32x128xf32> to vector<32x128xf32>
    %c2 = arith.constant 2 : index
    %107 = memref.load %arg3[%c2] : memref<4xf32, #tpu.memory_space<smem>>
    %108 = vector.broadcast %107 : f32 to vector<32x128xf32>
    %109 = arith.mulf %106, %108 : vector<32x128xf32>
    %c2_33 = arith.constant 2 : index
    %110 = memref.load %arg4[%c2_33] : memref<4xf32, #tpu.memory_space<smem>>
    %111 = vector.broadcast %110 : f32 to vector<32x128xf32>
    %112 = arith.addf %109, %111 : vector<32x128xf32>
    %c0_34 = arith.constant 0 : index
    %c2_35 = arith.constant 2 : index
    %c0_36 = arith.constant 0 : index
    %c0_37 = arith.constant 0 : index
    %113 = vector.load %arg2[%c0_34, %c2_35, %c0_36, %c0_37] : memref<1x4x32x128xbf16, #tpu.memory_space<vmem>>, vector<1x1x32x128xbf16>
    %114 = vector.shape_cast %113 : vector<1x1x32x128xbf16> to vector<32x128xbf16>
    %115 = arith.extf %114 : vector<32x128xbf16> to vector<32x128xf32>
    %116 = arith.addf %112, %115 : vector<32x128xf32>
    %117 = vector.shape_cast %116 : vector<32x128xf32> to vector<1x32x128xf32>
    %cst_38 = arith.constant dense<0.000000e+00> : vector<1xf32>
    %118 = vector.multi_reduction <add>, %117, %cst_38 [1, 2] : vector<1x32x128xf32> to vector<1xf32>
    %119 = vector.shape_cast %118 : vector<1xf32> to vector<1x1x1xf32>
    %120 = vector.extract %119[0, 0, 0] : f32 from vector<1x1x1xf32>
    %121 = vector.broadcast %120 : f32 to vector<1x1xf32>
    %cst_39 = arith.constant 2.44140625E-4 : f32
    %122 = vector.broadcast %cst_39 : f32 to vector<1x1xf32>
    %123 = arith.mulf %121, %122 : vector<1x1xf32>
    %124 = arith.mulf %116, %116 : vector<32x128xf32>
    %125 = vector.shape_cast %124 : vector<32x128xf32> to vector<1x32x128xf32>
    %cst_40 = arith.constant dense<0.000000e+00> : vector<1xf32>
    %126 = vector.multi_reduction <add>, %125, %cst_40 [1, 2] : vector<1x32x128xf32> to vector<1xf32>
    %127 = vector.shape_cast %126 : vector<1xf32> to vector<1x1x1xf32>
    %128 = vector.extract %127[0, 0, 0] : f32 from vector<1x1x1xf32>
    %129 = vector.broadcast %128 : f32 to vector<1x1xf32>
    %cst_41 = arith.constant 2.44140625E-4 : f32
    %130 = vector.broadcast %cst_41 : f32 to vector<1x1xf32>
    %131 = arith.mulf %129, %130 : vector<1x1xf32>
    %132 = arith.mulf %123, %123 : vector<1x1xf32>
    %133 = arith.subf %131, %132 : vector<1x1xf32>
    %cst_42 = arith.constant 0.000000e+00 : f32
    %134 = vector.broadcast %cst_42 : f32 to vector<1x1xf32>
    %135 = arith.maximumf %133, %134 : vector<1x1xf32>
    %136 = vector.broadcast %123 : vector<1x1xf32> to vector<32x128xf32>
    %137 = arith.subf %116, %136 : vector<32x128xf32>
    %cst_43 = arith.constant 9.99999974E-6 : f32
    %138 = vector.broadcast %cst_43 : f32 to vector<1x1xf32>
    %139 = arith.addf %135, %138 : vector<1x1xf32>
    %140 = math.rsqrt %139 : vector<1x1xf32>
    %141 = vector.broadcast %140 : vector<1x1xf32> to vector<32x128xf32>
    %142 = arith.mulf %137, %141 : vector<32x128xf32>
    %cst_44 = arith.constant 5.000000e-01 : f32
    %143 = vector.broadcast %cst_44 : f32 to vector<32x128xf32>
    %144 = arith.mulf %143, %142 : vector<32x128xf32>
    %cst_45 = arith.constant 4.471500e-02 : f32
    %145 = vector.broadcast %cst_45 : f32 to vector<32x128xf32>
    %146 = arith.mulf %145, %142 : vector<32x128xf32>
    %147 = arith.mulf %146, %142 : vector<32x128xf32>
    %148 = arith.mulf %147, %142 : vector<32x128xf32>
    %149 = arith.addf %142, %148 : vector<32x128xf32>
    %cst_46 = arith.constant 0.797884583 : f32
    %150 = vector.broadcast %cst_46 : f32 to vector<32x128xf32>
    %151 = arith.mulf %150, %149 : vector<32x128xf32>
    %152 = math.tanh %151 : vector<32x128xf32>
    %cst_47 = arith.constant 1.000000e+00 : f32
    %153 = vector.broadcast %cst_47 : f32 to vector<32x128xf32>
    %154 = arith.addf %153, %152 : vector<32x128xf32>
    %155 = arith.mulf %144, %154 : vector<32x128xf32>
    %156 = vector.extract_strided_slice %2 {offsets = [1, 0, 0], sizes = [1, 32, 128], strides = [1, 1, 1]} : vector<2x32x128xf32> to vector<1x32x128xf32>
    %157 = vector.shape_cast %156 : vector<1x32x128xf32> to vector<32x128xf32>
    %c3 = arith.constant 3 : index
    %158 = memref.load %arg3[%c3] : memref<4xf32, #tpu.memory_space<smem>>
    %159 = vector.broadcast %158 : f32 to vector<32x128xf32>
    %160 = arith.mulf %157, %159 : vector<32x128xf32>
    %c3_48 = arith.constant 3 : index
    %161 = memref.load %arg4[%c3_48] : memref<4xf32, #tpu.memory_space<smem>>
    %162 = vector.broadcast %161 : f32 to vector<32x128xf32>
    %163 = arith.addf %160, %162 : vector<32x128xf32>
    %c0_49 = arith.constant 0 : index
    %c3_50 = arith.constant 3 : index
    %c0_51 = arith.constant 0 : index
    %c0_52 = arith.constant 0 : index
    %164 = vector.load %arg2[%c0_49, %c3_50, %c0_51, %c0_52] : memref<1x4x32x128xbf16, #tpu.memory_space<vmem>>, vector<1x1x32x128xbf16>
    %165 = vector.shape_cast %164 : vector<1x1x32x128xbf16> to vector<32x128xbf16>
    %166 = arith.extf %165 : vector<32x128xbf16> to vector<32x128xf32>
    %167 = arith.addf %163, %166 : vector<32x128xf32>
    %168 = vector.shape_cast %167 : vector<32x128xf32> to vector<1x32x128xf32>
    %cst_53 = arith.constant dense<0.000000e+00> : vector<1xf32>
    %169 = vector.multi_reduction <add>, %168, %cst_53 [1, 2] : vector<1x32x128xf32> to vector<1xf32>
    %170 = vector.shape_cast %169 : vector<1xf32> to vector<1x1x1xf32>
    %171 = vector.extract %170[0, 0, 0] : f32 from vector<1x1x1xf32>
    %172 = vector.broadcast %171 : f32 to vector<1x1xf32>
    %cst_54 = arith.constant 2.44140625E-4 : f32
    %173 = vector.broadcast %cst_54 : f32 to vector<1x1xf32>
    %174 = arith.mulf %172, %173 : vector<1x1xf32>
    %175 = arith.mulf %167, %167 : vector<32x128xf32>
    %176 = vector.shape_cast %175 : vector<32x128xf32> to vector<1x32x128xf32>
    %cst_55 = arith.constant dense<0.000000e+00> : vector<1xf32>
    %177 = vector.multi_reduction <add>, %176, %cst_55 [1, 2] : vector<1x32x128xf32> to vector<1xf32>
    %178 = vector.shape_cast %177 : vector<1xf32> to vector<1x1x1xf32>
    %179 = vector.extract %178[0, 0, 0] : f32 from vector<1x1x1xf32>
    %180 = vector.broadcast %179 : f32 to vector<1x1xf32>
    %cst_56 = arith.constant 2.44140625E-4 : f32
    %181 = vector.broadcast %cst_56 : f32 to vector<1x1xf32>
    %182 = arith.mulf %180, %181 : vector<1x1xf32>
    %183 = arith.mulf %174, %174 : vector<1x1xf32>
    %184 = arith.subf %182, %183 : vector<1x1xf32>
    %cst_57 = arith.constant 0.000000e+00 : f32
    %185 = vector.broadcast %cst_57 : f32 to vector<1x1xf32>
    %186 = arith.maximumf %184, %185 : vector<1x1xf32>
    %187 = vector.broadcast %174 : vector<1x1xf32> to vector<32x128xf32>
    %188 = arith.subf %167, %187 : vector<32x128xf32>
    %cst_58 = arith.constant 9.99999974E-6 : f32
    %189 = vector.broadcast %cst_58 : f32 to vector<1x1xf32>
    %190 = arith.addf %186, %189 : vector<1x1xf32>
    %191 = math.rsqrt %190 : vector<1x1xf32>
    %192 = vector.broadcast %191 : vector<1x1xf32> to vector<32x128xf32>
    %193 = arith.mulf %188, %192 : vector<32x128xf32>
    %cst_59 = arith.constant 5.000000e-01 : f32
    %194 = vector.broadcast %cst_59 : f32 to vector<32x128xf32>
    %195 = arith.mulf %194, %193 : vector<32x128xf32>
    %cst_60 = arith.constant 4.471500e-02 : f32
    %196 = vector.broadcast %cst_60 : f32 to vector<32x128xf32>
    %197 = arith.mulf %196, %193 : vector<32x128xf32>
    %198 = arith.mulf %197, %193 : vector<32x128xf32>
    %199 = arith.mulf %198, %193 : vector<32x128xf32>
    %200 = arith.addf %193, %199 : vector<32x128xf32>
    %cst_61 = arith.constant 0.797884583 : f32
    %201 = vector.broadcast %cst_61 : f32 to vector<32x128xf32>
    %202 = arith.mulf %201, %200 : vector<32x128xf32>
    %203 = math.tanh %202 : vector<32x128xf32>
    %cst_62 = arith.constant 1.000000e+00 : f32
    %204 = vector.broadcast %cst_62 : f32 to vector<32x128xf32>
    %205 = arith.addf %204, %203 : vector<32x128xf32>
    %206 = arith.mulf %195, %205 : vector<32x128xf32>
    %c0_63 = arith.constant 0 : index
    %c0_64 = arith.constant 0 : index
    %207 = memref.load %arg5[%c0_63, %c0_64] : memref<2x4xf32, #tpu.memory_space<smem>>
    %208 = vector.broadcast %207 : f32 to vector<32x128xf32>
    %209 = arith.mulf %53, %208 : vector<32x128xf32>
    %c0_65 = arith.constant 0 : index
    %c1_66 = arith.constant 1 : index
    %210 = memref.load %arg5[%c0_65, %c1_66] : memref<2x4xf32, #tpu.memory_space<smem>>
    %211 = vector.broadcast %210 : f32 to vector<32x128xf32>
    %212 = arith.mulf %104, %211 : vector<32x128xf32>
    %213 = arith.addf %209, %212 : vector<32x128xf32>
    %c0_67 = arith.constant 0 : index
    %c2_68 = arith.constant 2 : index
    %214 = memref.load %arg5[%c0_67, %c2_68] : memref<2x4xf32, #tpu.memory_space<smem>>
    %215 = vector.broadcast %214 : f32 to vector<32x128xf32>
    %216 = arith.mulf %155, %215 : vector<32x128xf32>
    %217 = arith.addf %213, %216 : vector<32x128xf32>
    %c0_69 = arith.constant 0 : index
    %c3_70 = arith.constant 3 : index
    %218 = memref.load %arg5[%c0_69, %c3_70] : memref<2x4xf32, #tpu.memory_space<smem>>
    %219 = vector.broadcast %218 : f32 to vector<32x128xf32>
    %220 = arith.mulf %206, %219 : vector<32x128xf32>
    %221 = arith.addf %217, %220 : vector<32x128xf32>
    %c0_71 = arith.constant 0 : index
    %222 = memref.load %arg6[%c0_71] : memref<2xf32, #tpu.memory_space<smem>>
    %223 = vector.broadcast %222 : f32 to vector<32x128xf32>
    %224 = arith.addf %221, %223 : vector<32x128xf32>
    %225 = vector.shape_cast %224 : vector<32x128xf32> to vector<1x32x128xf32>
    %cst_72 = arith.constant dense<0.000000e+00> : vector<1xf32>
    %226 = vector.multi_reduction <add>, %225, %cst_72 [1, 2] : vector<1x32x128xf32> to vector<1xf32>
    %227 = vector.shape_cast %226 : vector<1xf32> to vector<1x1x1xf32>
    %228 = vector.extract %227[0, 0, 0] : f32 from vector<1x1x1xf32>
    %229 = vector.broadcast %228 : f32 to vector<1x1xf32>
    %cst_73 = arith.constant 2.44140625E-4 : f32
    %230 = vector.broadcast %cst_73 : f32 to vector<1x1xf32>
    %231 = arith.mulf %229, %230 : vector<1x1xf32>
    %232 = arith.mulf %224, %224 : vector<32x128xf32>
    %233 = vector.shape_cast %232 : vector<32x128xf32> to vector<1x32x128xf32>
    %cst_74 = arith.constant dense<0.000000e+00> : vector<1xf32>
    %234 = vector.multi_reduction <add>, %233, %cst_74 [1, 2] : vector<1x32x128xf32> to vector<1xf32>
    %235 = vector.shape_cast %234 : vector<1xf32> to vector<1x1x1xf32>
    %236 = vector.extract %235[0, 0, 0] : f32 from vector<1x1x1xf32>
    %237 = vector.broadcast %236 : f32 to vector<1x1xf32>
    %cst_75 = arith.constant 2.44140625E-4 : f32
    %238 = vector.broadcast %cst_75 : f32 to vector<1x1xf32>
    %239 = arith.mulf %237, %238 : vector<1x1xf32>
    %240 = arith.mulf %231, %231 : vector<1x1xf32>
    %241 = arith.subf %239, %240 : vector<1x1xf32>
    %cst_76 = arith.constant 0.000000e+00 : f32
    %242 = vector.broadcast %cst_76 : f32 to vector<1x1xf32>
    %243 = arith.maximumf %241, %242 : vector<1x1xf32>
    %244 = vector.broadcast %231 : vector<1x1xf32> to vector<32x128xf32>
    %245 = arith.subf %224, %244 : vector<32x128xf32>
    %cst_77 = arith.constant 9.99999974E-6 : f32
    %246 = vector.broadcast %cst_77 : f32 to vector<1x1xf32>
    %247 = arith.addf %243, %246 : vector<1x1xf32>
    %248 = math.rsqrt %247 : vector<1x1xf32>
    %249 = vector.broadcast %248 : vector<1x1xf32> to vector<32x128xf32>
    %250 = arith.mulf %245, %249 : vector<32x128xf32>
    %cst_78 = arith.constant 5.000000e-01 : f32
    %251 = vector.broadcast %cst_78 : f32 to vector<32x128xf32>
    %252 = arith.mulf %251, %250 : vector<32x128xf32>
    %cst_79 = arith.constant 4.471500e-02 : f32
    %253 = vector.broadcast %cst_79 : f32 to vector<32x128xf32>
    %254 = arith.mulf %253, %250 : vector<32x128xf32>
    %255 = arith.mulf %254, %250 : vector<32x128xf32>
    %256 = arith.mulf %255, %250 : vector<32x128xf32>
    %257 = arith.addf %250, %256 : vector<32x128xf32>
    %cst_80 = arith.constant 0.797884583 : f32
    %258 = vector.broadcast %cst_80 : f32 to vector<32x128xf32>
    %259 = arith.mulf %258, %257 : vector<32x128xf32>
    %260 = math.tanh %259 : vector<32x128xf32>
    %cst_81 = arith.constant 1.000000e+00 : f32
    %261 = vector.broadcast %cst_81 : f32 to vector<32x128xf32>
    %262 = arith.addf %261, %260 : vector<32x128xf32>
    %263 = arith.mulf %252, %262 : vector<32x128xf32>
    %c0_82 = arith.constant 0 : index
    %c0_83 = arith.constant 0 : index
    %c0_84 = arith.constant 0 : index
    %c0_85 = arith.constant 0 : index
    %264 = vector.load %arg7[%c0_82, %c0_83, %c0_84, %c0_85] : memref<1x2x32x128xf32, #tpu.memory_space<vmem>>, vector<1x1x32x128xf32>
    %265 = vector.shape_cast %264 : vector<1x1x32x128xf32> to vector<32x128xf32>
    %266 = vector.shape_cast %263 : vector<32x128xf32> to vector<1x1x32x128xf32>
    tpu.vector_store %arg7[%c0_82, %c0_83, %c0_84, %c0_85], %266 {strides = array<i32>} : memref<1x2x32x128xf32, #tpu.memory_space<vmem>>, vector<1x1x32x128xf32>,
    %c1_86 = arith.constant 1 : index
    %c0_87 = arith.constant 0 : index
    %267 = memref.load %arg5[%c1_86, %c0_87] : memref<2x4xf32, #tpu.memory_space<smem>>
    %268 = vector.broadcast %267 : f32 to vector<32x128xf32>
    %269 = arith.mulf %53, %268 : vector<32x128xf32>
    %c1_88 = arith.constant 1 : index
    %c1_89 = arith.constant 1 : index
    %270 = memref.load %arg5[%c1_88, %c1_89] : memref<2x4xf32, #tpu.memory_space<smem>>
    %271 = vector.broadcast %270 : f32 to vector<32x128xf32>
    %272 = arith.mulf %104, %271 : vector<32x128xf32>
    %273 = arith.addf %269, %272 : vector<32x128xf32>
    %c1_90 = arith.constant 1 : index
    %c2_91 = arith.constant 2 : index
    %274 = memref.load %arg5[%c1_90, %c2_91] : memref<2x4xf32, #tpu.memory_space<smem>>
    %275 = vector.broadcast %274 : f32 to vector<32x128xf32>
    %276 = arith.mulf %155, %275 : vector<32x128xf32>
    %277 = arith.addf %273, %276 : vector<32x128xf32>
    %c1_92 = arith.constant 1 : index
    %c3_93 = arith.constant 3 : index
    %278 = memref.load %arg5[%c1_92, %c3_93] : memref<2x4xf32, #tpu.memory_space<smem>>
    %279 = vector.broadcast %278 : f32 to vector<32x128xf32>
    %280 = arith.mulf %206, %279 : vector<32x128xf32>
    %281 = arith.addf %277, %280 : vector<32x128xf32>
    %c1_94 = arith.constant 1 : index
    %282 = memref.load %arg6[%c1_94] : memref<2xf32, #tpu.memory_space<smem>>
    %283 = vector.broadcast %282 : f32 to vector<32x128xf32>
    %284 = arith.addf %281, %283 : vector<32x128xf32>
    %285 = vector.shape_cast %284 : vector<32x128xf32> to vector<1x32x128xf32>
    %cst_95 = arith.constant dense<0.000000e+00> : vector<1xf32>
    %286 = vector.multi_reduction <add>, %285, %cst_95 [1, 2] : vector<1x32x128xf32> to vector<1xf32>
    %287 = vector.shape_cast %286 : vector<1xf32> to vector<1x1x1xf32>
    %288 = vector.extract %287[0, 0, 0] : f32 from vector<1x1x1xf32>
    %289 = vector.broadcast %288 : f32 to vector<1x1xf32>
    %cst_96 = arith.constant 2.44140625E-4 : f32
    %290 = vector.broadcast %cst_96 : f32 to vector<1x1xf32>
    %291 = arith.mulf %289, %290 : vector<1x1xf32>
    %292 = arith.mulf %284, %284 : vector<32x128xf32>
    %293 = vector.shape_cast %292 : vector<32x128xf32> to vector<1x32x128xf32>
    %cst_97 = arith.constant dense<0.000000e+00> : vector<1xf32>
    %294 = vector.multi_reduction <add>, %293, %cst_97 [1, 2] : vector<1x32x128xf32> to vector<1xf32>
    %295 = vector.shape_cast %294 : vector<1xf32> to vector<1x1x1xf32>
    %296 = vector.extract %295[0, 0, 0] : f32 from vector<1x1x1xf32>
    %297 = vector.broadcast %296 : f32 to vector<1x1xf32>
    %cst_98 = arith.constant 2.44140625E-4 : f32
    %298 = vector.broadcast %cst_98 : f32 to vector<1x1xf32>
    %299 = arith.mulf %297, %298 : vector<1x1xf32>
    %300 = arith.mulf %291, %291 : vector<1x1xf32>
    %301 = arith.subf %299, %300 : vector<1x1xf32>
    %cst_99 = arith.constant 0.000000e+00 : f32
    %302 = vector.broadcast %cst_99 : f32 to vector<1x1xf32>
    %303 = arith.maximumf %301, %302 : vector<1x1xf32>
    %304 = vector.broadcast %291 : vector<1x1xf32> to vector<32x128xf32>
    %305 = arith.subf %284, %304 : vector<32x128xf32>
    %cst_100 = arith.constant 9.99999974E-6 : f32
    %306 = vector.broadcast %cst_100 : f32 to vector<1x1xf32>
    %307 = arith.addf %303, %306 : vector<1x1xf32>
    %308 = math.rsqrt %307 : vector<1x1xf32>
    %309 = vector.broadcast %308 : vector<1x1xf32> to vector<32x128xf32>
    %310 = arith.mulf %305, %309 : vector<32x128xf32>
    %cst_101 = arith.constant 5.000000e-01 : f32
    %311 = vector.broadcast %cst_101 : f32 to vector<32x128xf32>
    %312 = arith.mulf %311, %310 : vector<32x128xf32>
    %cst_102 = arith.constant 4.471500e-02 : f32
    %313 = vector.broadcast %cst_102 : f32 to vector<32x128xf32>
    %314 = arith.mulf %313, %310 : vector<32x128xf32>
    %315 = arith.mulf %314, %310 : vector<32x128xf32>
    %316 = arith.mulf %315, %310 : vector<32x128xf32>
    %317 = arith.addf %310, %316 : vector<32x128xf32>
    %cst_103 = arith.constant 0.797884583 : f32
    %318 = vector.broadcast %cst_103 : f32 to vector<32x128xf32>
    %319 = arith.mulf %318, %317 : vector<32x128xf32>
    %320 = math.tanh %319 : vector<32x128xf32>
    %cst_104 = arith.constant 1.000000e+00 : f32
    %321 = vector.broadcast %cst_104 : f32 to vector<32x128xf32>
    %322 = arith.addf %321, %320 : vector<32x128xf32>
    %323 = arith.mulf %312, %322 : vector<32x128xf32>
    %c0_105 = arith.constant 0 : index
    %c1_106 = arith.constant 1 : index
    %c0_107 = arith.constant 0 : index
    %c0_108 = arith.constant 0 : index
    %324 = vector.load %arg7[%c0_105, %c1_106, %c0_107, %c0_108] : memref<1x2x32x128xf32, #tpu.memory_space<vmem>>, vector<1x1x32x128xf32>
    %325 = vector.shape_cast %324 : vector<1x1x32x128xf32> to vector<32x128xf32>
    %326 = vector.shape_cast %323 : vector<32x128xf32> to vector<1x1x32x128xf32>
    tpu.vector_store %arg7[%c0_105, %c1_106, %c0_107, %c0_108], %326 {strides = array<i32>} : memref<1x2x32x128xf32, #tpu.memory_space<vmem>>, vector<1x1x32x128xf32>,
    return
  }
  func.func @transform_0(%arg0: i32) -> (i32, i32, i32, i32) {
    %c0_i32 = arith.constant 0 : i32
    %c0_i32_0 = arith.constant 0 : i32
    %c0_i32_1 = arith.constant 0 : i32
    %c0_i32_2 = arith.constant 0 : i32
    return %arg0, %c0_i32, %c0_i32_0, %c0_i32_1 : i32, i32, i32, i32
  }
  func.func @transform_1(%arg0: i32) -> (i32, i32, i32, i32) {
    %c0_i32 = arith.constant 0 : i32
    %c0_i32_0 = arith.constant 0 : i32
    %c0_i32_1 = arith.constant 0 : i32
    %c0_i32_2 = arith.constant 0 : i32
    return %arg0, %c0_i32, %c0_i32_0, %c0_i32_1 : i32, i32, i32, i32
  }
  func.func @transform_2(%arg0: i32) -> i32 {
    %c0_i32 = arith.constant 0 : i32
    %c0_i32_0 = arith.constant 0 : i32
    return %c0_i32 : i32
  }
  func.func @transform_3(%arg0: i32) -> i32 {
    %c0_i32 = arith.constant 0 : i32
    %c0_i32_0 = arith.constant 0 : i32
    return %c0_i32 : i32
  }
  func.func @transform_4(%arg0: i32) -> (i32, i32) {
    %c0_i32 = arith.constant 0 : i32
    %c0_i32_0 = arith.constant 0 : i32
    %c0_i32_1 = arith.constant 0 : i32
    return %c0_i32, %c0_i32_0 : i32, i32
  }
  func.func @transform_5(%arg0: i32) -> i32 {
    %c0_i32 = arith.constant 0 : i32
    %c0_i32_0 = arith.constant 0 : i32
    return %c0_i32 : i32
  }
  func.func @transform_6(%arg0: i32) -> (i32, i32, i32, i32) {
    %c0_i32 = arith.constant 0 : i32
    %c0_i32_0 = arith.constant 0 : i32
    %c0_i32_1 = arith.constant 0 : i32
    %c0_i32_2 = arith.constant 0 : i32
    return %arg0, %c0_i32, %c0_i32_0, %c0_i32_1 : i32, i32, i32, i32
  }
}

</mosaic_0001>

<llo_original>
// kernel: fourier_block_forward.2
$region0: #{fourier_block_forward.2}
  #allocation0 [shape = 'u32[]', space=smem, size = 0x4, offset = 0x4, fixed_abs, tag = 'smem constant byte address 0x4 - core index']
  #allocation1 [shape = 'u32[144,128]{1,0:T(1,128)}', space=vmem, size = 0x12000, scoped, tag = 'internal scratch']
  %s0 = inlined_call_operand.vmem [shape: f32[2,8,128], index: 0, kind: input, shape index: {}]
  %s1 = inlined_call_operand.vmem [shape: f32[8,128], index: 1, kind: input, shape index: {}]
  %s2 = inlined_call_operand.vmem [shape: f32[8,128], index: 2, kind: input, shape index: {}]
  %s3 = inlined_call_operand.vmem [shape: f32[4,4,1], index: 3, kind: input, shape index: {}]
  %s4 = inlined_call_operand.vmem [shape: f32[2,8,128], index: 4, kind: output, shape index: {}]
  %s5 = sld [smem:[#allocation0]]
  $region49: #{fourier_block_forward.2} parent=0
    _
  %s7 = ssub.s32 1, %s5
  %s8 = scalar_select 0, %s7, %s5
  loop: start=0, step=1, limit=4
  $region2: #{fourier_block_forward.2} parent=0 // loop_pre_header
    _
  $region3: #{fourier_block_forward.2} parent=0 // loop_header
    %s10 = sphi 0, %s14
    %p11 = scmp.ge.s32.totalorder %s10, 4
    %s20 = sphi 0, %s22
    %s23 = sphi 0, %s20
    %s24 = sphi 0, %s23
    %s40 = sphi 0, %s24
    %s44 = sphi 0, %s44
    %s46 = sphi 0, %s44
    %s47 = sphi 0, %s46
    %s61 = sphi 0, %s47
    %s65 = sphi 0, %s65
    %s67 = sphi 0, %s65
    %s68 = sphi 0, %s67
    %s82 = sphi 0, %s68
    %s86 = sphi 0, %s86
    %s88 = sphi 0, %s86
    %s89 = sphi 0, %s88
    %s103 = sphi 0, %s89
    %s109 = sphi 0, %s111
    %s112 = sphi 0, %s109
    %s113 = sphi 0, %s112
    %s129 = sphi 0, %s113
  $region4: #{fourier_block_forward.2} parent=0 // loop_header_branch
    %13 = sbr.rel (%p11) target = $region8
  $region5: #{fourier_block_forward.2} parent=0 // loop_body
    %s15 = ssub.s32 %s10, 1
    %s16 = ssub.s32 %s10, 2
    %s17 = sadd.s32 %s10, 1
    %s18 = ssub.s32 %s10, %s17
    %p19 = scmp.eq.s32.totalorder %s18, 0
    %s21 = sadd.s32 %s20, 1
    %s22 = scalar_select %p19, %s20, %s21
    %p25 = pneg %p19
    %p26 = scmp.eq.s32.totalorder %s10, 1
    %p27 = por %p25, %p26
    %p28 = scmp.ne.s32.totalorder %s20, %s23
    %p29 = scmp.eq.s32.totalorder %s10, 0
    %p30 = por %p28, %p29
    %p31 = scmp.ne.s32.totalorder %s20, %s23
    %p32 = scmp.eq.s32.totalorder %s15, 1
    %p33 = por %p31, %p32
    %p34 = scmp.ne.s32.totalorder %s23, %s24
    %p35 = scmp.eq.s32.totalorder %s15, 0
    %p36 = por %p34, %p35
    %p37 = scmp.ne.s32.totalorder %s23, %s24
    %p38 = scmp.eq.s32.totalorder %s16, 1
    %p39 = por %p37, %p38
    %p41 = scmp.ne.s32.totalorder %s24, %s40
    %p42 = scmp.eq.s32.totalorder %s16, 0
    %p43 = por %p41, %p42
    %s45 = sadd.s32 %s44, 1
    %p48 = scmp.eq.s32.totalorder %s10, 1
    %p49 = scmp.ne.s32.totalorder %s44, %s46
    %p50 = scmp.eq.s32.totalorder %s10, 0
    %p51 = por %p49, %p50
    %p52 = scmp.ne.s32.totalorder %s44, %s46
    %p53 = scmp.eq.s32.totalorder %s15, 1
    %p54 = por %p52, %p53
    %p55 = scmp.ne.s32.totalorder %s46, %s47
    %p56 = scmp.eq.s32.totalorder %s15, 0
    %p57 = por %p55, %p56
    %p58 = scmp.ne.s32.totalorder %s46, %s47
    %p59 = scmp.eq.s32.totalorder %s16, 1
    %p60 = por %p58, %p59
    %p62 = scmp.ne.s32.totalorder %s47, %s61
    %p63 = scmp.eq.s32.totalorder %s16, 0
    %p64 = por %p62, %p63
    %s66 = sadd.s32 %s65, 1
    %p69 = scmp.eq.s32.totalorder %s10, 1
    %p70 = scmp.ne.s32.totalorder %s65, %s67
    %p71 = scmp.eq.s32.totalorder %s10, 0
    %p72 = por %p70, %p71
    %p73 = scmp.ne.s32.totalorder %s65, %s67
    %p74 = scmp.eq.s32.totalorder %s15, 1
    %p75 = por %p73, %p74
    %p76 = scmp.ne.s32.totalorder %s67, %s68
    %p77 = scmp.eq.s32.totalorder %s15, 0
    %p78 = por %p76, %p77
    %p79 = scmp.ne.s32.totalorder %s67, %s68
    %p80 = scmp.eq.s32.totalorder %s16, 1
    %p81 = por %p79, %p80
    %p83 = scmp.ne.s32.totalorder %s68, %s82
    %p84 = scmp.eq.s32.totalorder %s16, 0
    %p85 = por %p83, %p84
    %s87 = sadd.s32 %s86, 1
    %p90 = scmp.eq.s32.totalorder %s10, 1
    %p91 = scmp.ne.s32.totalorder %s86, %s88
    %p92 = scmp.eq.s32.totalorder %s10, 0
    %p93 = por %p91, %p92
    %p94 = scmp.ne.s32.totalorder %s86, %s88
    %p95 = scmp.eq.s32.totalorder %s15, 1
    %p96 = por %p94, %p95
    %p97 = scmp.ne.s32.totalorder %s88, %s89
    %p98 = scmp.eq.s32.totalorder %s15, 0
    %p99 = por %p97, %p98
    %p100 = scmp.ne.s32.totalorder %s88, %s89
    %p101 = scmp.eq.s32.totalorder %s16, 1
    %p102 = por %p100, %p101
    %p104 = scmp.ne.s32.totalorder %s89, %s103
    %p105 = scmp.eq.s32.totalorder %s16, 0
    %p106 = por %p104, %p105
    %s107 = ssub.s32 %s10, %s17
    %p108 = scmp.eq.s32.totalorder %s107, 0
    %s110 = sadd.s32 %s109, 1
    %s111 = scalar_select %p108, %s109, %s110
    %p114 = pneg %p108
    %p115 = scmp.eq.s32.totalorder %s10, 1
    %p116 = por %p114, %p115
    %p117 = scmp.ne.s32.totalorder %s109, %s112
    %p118 = scmp.eq.s32.totalorder %s10, 0
    %p119 = por %p117, %p118
    %p120 = scmp.ne.s32.totalorder %s109, %s112
    %p121 = scmp.eq.s32.totalorder %s15, 1
    %p122 = por %p120, %p121
    %p123 = scmp.ne.s32.totalorder %s112, %s113
    %p124 = scmp.eq.s32.totalorder %s15, 0
    %p125 = por %p123, %p124
    %p126 = scmp.ne.s32.totalorder %s112, %s113
    %p127 = scmp.eq.s32.totalorder %s16, 1
    %p128 = por %p126, %p127
    %p130 = scmp.ne.s32.totalorder %s113, %s129
    %p131 = scmp.eq.s32.totalorder %s16, 0
    %p132 = por %p130, %p131
    %p133 = scmp.le.s32.totalorder 1, %s10
    %p134 = scmp.lt.s32.totalorder %s10, 3
    %p135 = pnand %p133, %p134
    %p136 = pneg %p135
    // Predicated region
    $region9: #{fourier_block_forward.2} parent=5 // pred_check
      _
    $region10: #{fourier_block_forward.2} parent=5 // pred_check_branch
      %138 = sbr.rel (%p135) target = $region12
    $region11: #{fourier_block_forward.2} parent=5 // pred_region
      %s139 = ssub.s32 %s10, 1
      // Predicated region
      $region13: #{fourier_block_forward.2} parent=11 // pred_check
        %p140 = pneg %p57
      $region14: #{fourier_block_forward.2} parent=11 // pred_check_branch
        %142 = sbr.rel (%p140) target = $region16
      $region15: #{fourier_block_forward.2} parent=11 // pred_region
        _
      $region16: #{fourier_block_forward.2} parent=11 // pred_fallthru
        _
      // Predicated region
      $region17: #{fourier_block_forward.2} parent=11 // pred_check
        %p143 = pneg %p78
      $region18: #{fourier_block_forward.2} parent=11 // pred_check_branch
        %145 = sbr.rel (%p143) target = $region20
      $region19: #{fourier_block_forward.2} parent=11 // pred_region
        _
      $region20: #{fourier_block_forward.2} parent=11 // pred_fallthru
        _
      // Predicated region
      $region21: #{fourier_block_forward.2} parent=11 // pred_check
        %p146 = pneg %p99
      $region22: #{fourier_block_forward.2} parent=11 // pred_check_branch
        %148 = sbr.rel (%p146) target = $region24
      $region23: #{fourier_block_forward.2} parent=11 // pred_region
        _
      $region24: #{fourier_block_forward.2} parent=11 // pred_fallthru
        _
    $region12: #{fourier_block_forward.2} parent=5 // pred_fallthru
      _
    %p149 = scmp.lt.s32.totalorder %s10, 2
    // Predicated region
    $region25: #{fourier_block_forward.2} parent=5 // pred_check
      %p150 = pneg %p149
    $region26: #{fourier_block_forward.2} parent=5 // pred_check_branch
      %152 = sbr.rel (%p150) target = $region28
    $region27: #{fourier_block_forward.2} parent=5 // pred_region
      // Predicated region
      $region29: #{fourier_block_forward.2} parent=27 // pred_check
        %p153 = pneg %p30
      $region30: #{fourier_block_forward.2} parent=27 // pred_check_branch
        %155 = sbr.rel (%p153) target = $region32
      $region31: #{fourier_block_forward.2} parent=27 // pred_region
        %p156 = scmp.lt.s32.totalorder %s10, 1
        %s157 = scalar_select %p156, %s10, 1
        %s158 = smul.addr %s157, 8
        %s159 = scalar_lea.vmem %s0, %s158
      $region32: #{fourier_block_forward.2} parent=27 // pred_fallthru
        _
    $region28: #{fourier_block_forward.2} parent=5 // pred_fallthru
      _
    %p160 = scmp.le.s32.totalorder 1, %s10
    %p161 = scmp.lt.s32.totalorder %s10, 3
    %p162 = pnand %p160, %p161
    %p163 = pneg %p162
    // Predicated region
    $region33: #{fourier_block_forward.2} parent=5 // pred_check
      _
    $region34: #{fourier_block_forward.2} parent=5 // pred_check_branch
      %165 = sbr.rel (%p162) target = $region36
    $region35: #{fourier_block_forward.2} parent=5 // pred_region
      %s166 = ssub.s32 %s10, 1
      %p167 = scmp.lt.s32.totalorder %s15, 1
      %s168 = scalar_select %p167, %s15, 1
      %s169 = smul.addr %s168, 8
      %s170 = scalar_lea.vmem %s0, %s169
      %p171 = pneg %p36
      %p172 = pneg %p33
      %p173 = pneg %p57
      %p174 = pneg %p54
      %p175 = pneg %p78
      %p176 = pneg %p75
      %p177 = pneg %p99
      %p178 = pneg %p96
      %p179 = pneg %p125
      %p180 = pneg %p122
      %p181 = scmp.lt.s32.totalorder %s15, 1
      %s182 = scalar_select %p181, %s15, 1
      %s183 = smul.addr %s182, 8
      %s184 = scalar_lea.vmem %s4, %s183
      %p185 = scmp.lt.s32.totalorder %s15, 1
      %s186 = scalar_select %p185, %s15, 1
      %s187 = smul.addr %s186, 8
      %s188 = scalar_lea.vmem %s0, %s187
      %p189 = scmp.lt.s32.totalorder %s15, 1
      %s190 = scalar_select %p189, %s15, 1
      %s191 = smul.addr %s190, 8
      %s192 = scalar_lea.vmem %s4, %s191
      %v193 = vld [vmem:[%s188] sm:$0xff]
      %v194 = vld [vmem:[%s3] sm:$0xf]
      %196 = vset.pattern.permute.xlu0 0
      %197 = vperm.xlu0 %196, %v194
      %v198 = vpop.permute.xlu0 %197
      %v200 = vlaneseq
      %v201 = vshrl.u32 %v200, 7
      %v202 = vsub.s32 0, %v201
      %v203 = vrot.slane %v193, %v202
      %v204 = vmul.f32 %v198, %v203
      %s205 = scalar_lea.vmem %s3, 4
      %v206 = vld [vmem:[%s205] sm:$0xf]
      %208 = vset.pattern.permute.xlu0 0
      %209 = vperm.xlu0 %208, %v206
      %v210 = vpop.permute.xlu0 %209
      %v212 = vlaneseq
      %v213 = vshrl.u32 %v212, 7
      %v214 = vsub.s32 2, %v213
      %v215 = vrot.slane %v193, %v214
      %v216 = vmul.f32 %v210, %v215
      %v217 = vadd.f32 %v204, %v216
      %s218 = scalar_lea.vmem %s3, 8
      %v219 = vld [vmem:[%s218] sm:$0xf]
      %221 = vset.pattern.permute.xlu0 0
      %222 = vperm.xlu0 %221, %v219
      %v223 = vpop.permute.xlu0 %222
      %v225 = vlaneseq
      %v226 = vshrl.u32 %v225, 7
      %v227 = vsub.s32 4, %v226
      %v228 = vrot.slane %v193, %v227
      %v229 = vmul.f32 %v223, %v228
      %v230 = vadd.f32 %v217, %v229
      %s231 = scalar_lea.vmem %s3, 12
      %v232 = vld [vmem:[%s231] sm:$0xf]
      %234 = vset.pattern.permute.xlu0 0
      %235 = vperm.xlu0 %234, %v232
      %v236 = vpop.permute.xlu0 %235
      %v238 = vlaneseq
      %v239 = vshrl.u32 %v238, 7
      %v240 = vsub.s32 6, %v239
      %v241 = vrot.slane %v193, %v240
      %v242 = vmul.f32 %v236, %v241
      %v243 = vadd.f32 %v230, %v242
      %vm244 = vcmask 1043456
      %v245 = vsel %vm244, %v243, 0.0
      %246 = vadd.xlane.f32.xlu0 %v245
      %v247 = vpop.xlane.xlu0 %246
      %v248 = vmul.f32 %v247, 0.020833334
      %v249 = vmul.f32 %v243, %v243
      %v250 = vsel %vm244, %v249, 0.0
      %251 = vadd.xlane.f32.xlu0 %v250
      %v252 = vpop.xlane.xlu0 %251
      %v253 = vmul.f32 %v252, 0.020833334
      %v254 = vmul.f32 %v248, %v248
      %v255 = vsub.f32 %v253, %v254
      %v256 = vmax.f32 %v255, 0.0
      %v257 = vsub.f32 %v243, %v248
      %v258 = vadd.f32 %v256, 1e-05
      %v259 = vrsqrt.pop %v258
      %v260 = vmul.f32 %v257, %v259
      %v261 = vsub.f32 0.0, %v260
      %v262 = vmul.f32 %v261, 1.442695
      %v263 = vpow.pop %v262
      %v264 = vadd.f32 %v263, 1.0
      %v265 = vrcp.pop %v264
      %266 = vadd.xlane.f32.xlu0 %v193
      %v267 = vpop.xlane.xlu0 %266
      %v268 = vmul.f32 %v267, 0.020833334
      %v269 = vmul.f32 %v193, %v193
      %270 = vadd.xlane.f32.xlu0 %v269
      %v271 = vpop.xlane.xlu0 %270
      %v272 = vmul.f32 %v271, 0.020833334
      %v273 = vmul.f32 %v268, %v268
      %v274 = vsub.f32 %v272, %v273
      %v275 = vmax.f32 %v274, 0.0
      %v276 = vsub.f32 %v193, %v268
      %v277 = vadd.f32 %v275, 1e-05
      %v278 = vrsqrt.pop %v277
      %v279 = vmul.f32 %v276, %v278
      %v280 = vld [vmem:[%s1] sm:$0xff]
      %v281 = vmul.f32 %v279, %v280
      %v282 = vld [vmem:[%s2] sm:$0xff]
      %v283 = vadd.f32 %v281, %v282
      %v284 = vmul.f32 %v283, %v265
      %285 = vst [vmem:[%s192] sm:$0xf] %v284
      %v287 = vrot.slane %v265, 4
      %v289 = vmul.f32 %v283, %v287
      %290 = vst [vmem:[%s192] sm:$0xf0] %v289
      %p291 = scmp.lt.s32.totalorder %s15, 1
      %s292 = scalar_select %p291, %s15, 1
      %s293 = smul.addr %s292, 8
      %s294 = scalar_lea.vmem %s4, %s293
      // Predicated region
      $region37: #{fourier_block_forward.2} parent=35 // pred_check
        %p295 = pneg %p122
      $region38: #{fourier_block_forward.2} parent=35 // pred_check_branch
        %297 = sbr.rel (%p295) target = $region40
      $region39: #{fourier_block_forward.2} parent=35 // pred_region
        _
      $region40: #{fourier_block_forward.2} parent=35 // pred_fallthru
        _
    $region36: #{fourier_block_forward.2} parent=5 // pred_fallthru
      _
    %p298 = scmp.le.s32.totalorder 2, %s10
    // Predicated region
    $region41: #{fourier_block_forward.2} parent=5 // pred_check
      %p299 = pneg %p298
    $region42: #{fourier_block_forward.2} parent=5 // pred_check_branch
      %301 = sbr.rel (%p299) target = $region44
    $region43: #{fourier_block_forward.2} parent=5 // pred_region
      %s302 = ssub.s32 %s10, 2
      // Predicated region
      $region45: #{fourier_block_forward.2} parent=43 // pred_check
        %p303 = pneg %p128
      $region46: #{fourier_block_forward.2} parent=43 // pred_check_branch
        %305 = sbr.rel (%p303) target = $region48
      $region47: #{fourier_block_forward.2} parent=43 // pred_region
        %p306 = scmp.lt.s32.totalorder %s16, 1
        %s307 = scalar_select %p306, %s16, 1
        %s308 = smul.addr %s307, 8
        %s309 = scalar_lea.vmem %s4, %s308
      $region48: #{fourier_block_forward.2} parent=43 // pred_fallthru
        _
    $region44: #{fourier_block_forward.2} parent=5 // pred_fallthru
      _
  $region6: #{fourier_block_forward.2} parent=0 // loop_footer
    %s14 = sadd.s32 1, %s10
  $region7: #{fourier_block_forward.2} parent=0 // loop_footer_branch
    %9 = sbr.rel target = $region3
  $region8: #{fourier_block_forward.2} parent=0 // loop_exit
    _

// kernel: reverse.1
$region0: #{reverse.1}
  #allocation0 [shape = 's32[1]{0}', space=sflag, size = 0x4, scoped, tag = 'scoped memory for reverse.1']
  %s0 = inlined_call_operand.vmem [shape: f32[2,4,16,16,7], index: 0, kind: input, shape index: {}]
  %s1 = inlined_call_operand.vmem [shape: f32[2,4,16,16,7], index: 1, kind: output, shape index: {}]
  %s2 = scalar_lea.vmem %s0, 96
  %v3 = vld [vmem:[%s2] sm:$0xff]
  %4 = vst [vmem:[%s1] sm:$0xff] %v3
  %s5 = scalar_lea.vmem %s0, 544
  %v6 = vld [vmem:[%s5] sm:$0xff]
  %s7 = scalar_lea.vmem %s1, 448
  %8 = vst [vmem:[%s7] sm:$0xff] %v6
  %s9 = scalar_lea.vmem %s0, 208
  %v10 = vld [vmem:[%s9] sm:$0xff]
  %s11 = scalar_lea.vmem %s1, 112
  %12 = vst [vmem:[%s11] sm:$0xff] %v10
  %s13 = scalar_lea.vmem %s0, 656
  %v14 = vld [vmem:[%s13] sm:$0xff]
  %s15 = scalar_lea.vmem %s1, 560
  %16 = vst [vmem:[%s15] sm:$0xff] %v14
  %s17 = scalar_lea.vmem %s0, 320
  %v18 = vld [vmem:[%s17] sm:$0xff]
  %s19 = scalar_lea.vmem %s1, 224
  %20 = vst [vmem:[%s19] sm:$0xff] %v18
  %s21 = scalar_lea.vmem %s0, 768
  %v22 = vld [vmem:[%s21] sm:$0xff]
  %s23 = scalar_lea.vmem %s1, 672
  %24 = vst [vmem:[%s23] sm:$0xff] %v22
  %s25 = scalar_lea.vmem %s0, 432
  %v26 = vld [vmem:[%s25] sm:$0xff]
  %s27 = scalar_lea.vmem %s1, 336
  %28 = vst [vmem:[%s27] sm:$0xff] %v26
  %s29 = scalar_lea.vmem %s0, 880
  %v30 = vld [vmem:[%s29] sm:$0xff]
  %s31 = scalar_lea.vmem %s1, 784
  %32 = vst [vmem:[%s31] sm:$0xff] %v30
  %s33 = scalar_lea.vmem %s0, 80
  %v34 = vld [vmem:[%s33] sm:$0xff]
  %s35 = scalar_lea.vmem %s1, 16
  %36 = vst [vmem:[%s35] sm:$0xff] %v34
  %s37 = scalar_lea.vmem %s0, 528
  %v38 = vld [vmem:[%s37] sm:$0xff]
  %s39 = scalar_lea.vmem %s1, 464
  %40 = vst [vmem:[%s39] sm:$0xff] %v38
  %s41 = scalar_lea.vmem %s0, 192
  %v42 = vld [vmem:[%s41] sm:$0xff]
  %s43 = scalar_lea.vmem %s1, 128
  %44 = vst [vmem:[%s43] sm:$0xff] %v42
  %s45 = scalar_lea.vmem %s0, 640
  %v46 = vld [vmem:[%s45] sm:$0xff]
  %s47 = scalar_lea.vmem %s1, 576
  %48 = vst [vmem:[%s47] sm:$0xff] %v46
  %s49 = scalar_lea.vmem %s0, 304
  %v50 = vld [vmem:[%s49] sm:$0xff]
  %s51 = scalar_lea.vmem %s1, 240
  %52 = vst [vmem:[%s51] sm:$0xff] %v50
  %s53 = scalar_lea.vmem %s0, 752
  %v54 = vld [vmem:[%s53] sm:$0xff]
  %s55 = scalar_lea.vmem %s1, 688
  %56 = vst [vmem:[%s55] sm:$0xff] %v54
  %s57 = scalar_lea.vmem %s0, 416
  %v58 = vld [vmem:[%s57] sm:$0xff]
  %s59 = scalar_lea.vmem %s1, 352
  %60 = vst [vmem:[%s59] sm:$0xff] %v58
  %s61 = scalar_lea.vmem %s0, 864
  %v62 = vld [vmem:[%s61] sm:$0xff]
  %s63 = scalar_lea.vmem %s1, 800
  %64 = vst [vmem:[%s63] sm:$0xff] %v62
  %s65 = scalar_lea.vmem %s0, 64
  %v66 = vld [vmem:[%s65] sm:$0xff]
  %s67 = scalar_lea.vmem %s1, 32
  %68 = vst [vmem:[%s67] sm:$0xff] %v66
  %s69 = scalar_lea.vmem %s0, 512
  %v70 = vld [vmem:[%s69] sm:$0xff]
  %s71 = scalar_lea.vmem %s1, 480
  %72 = vst [vmem:[%s71] sm:$0xff] %v70
  %s73 = scalar_lea.vmem %s0, 176
  %v74 = vld [vmem:[%s73] sm:$0xff]
  %s75 = scalar_lea.vmem %s1, 144
  %76 = vst [vmem:[%s75] sm:$0xff] %v74
  %s77 = scalar_lea.vmem %s0, 624
  %v78 = vld [vmem:[%s77] sm:$0xff]
  %s79 = scalar_lea.vmem %s1, 592
  %80 = vst [vmem:[%s79] sm:$0xff] %v78
  %s81 = scalar_lea.vmem %s0, 288
  %v82 = vld [vmem:[%s81] sm:$0xff]
  %s83 = scalar_lea.vmem %s1, 256
  %84 = vst [vmem:[%s83] sm:$0xff] %v82
  %s85 = scalar_lea.vmem %s0, 736
  %v86 = vld [vmem:[%s85] sm:$0xff]
  %s87 = scalar_lea.vmem %s1, 704
  %88 = vst [vmem:[%s87] sm:$0xff] %v86
  %s89 = scalar_lea.vmem %s0, 400
  %v90 = vld [vmem:[%s89] sm:$0xff]
  %s91 = scalar_lea.vmem %s1, 368
  %92 = vst [vmem:[%s91] sm:$0xff] %v90
  %s93 = scalar_lea.vmem %s0, 848
  %v94 = vld [vmem:[%s93] sm:$0xff]
  %s95 = scalar_lea.vmem %s1, 816
  %96 = vst [vmem:[%s95] sm:$0xff] %v94
  %s97 = scalar_lea.vmem %s0, 48
  %v98 = vld [vmem:[%s97] sm:$0xff]
  %s99 = scalar_lea.vmem %s1, 48
  %100 = vst [vmem:[%s99] sm:$0xff] %v98
  %s101 = scalar_lea.vmem %s0, 496
  %v102 = vld [vmem:[%s101] sm:$0xff]
  %s103 = scalar_lea.vmem %s1, 496
  %104 = vst [vmem:[%s103] sm:$0xff] %v102
  %s105 = scalar_lea.vmem %s0, 160
  %v106 = vld [vmem:[%s105] sm:$0xff]
  %s107 = scalar_lea.vmem %s1, 160
  %108 = vst [vmem:[%s107] sm:$0xff] %v106
  %s109 = scalar_lea.vmem %s0, 608
  %v110 = vld [vmem:[%s109] sm:$0xff]
  %s111 = scalar_lea.vmem %s1, 608
  %112 = vst [vmem:[%s111] sm:$0xff] %v110
  %s113 = scalar_lea.vmem %s0, 272
  %v114 = vld [vmem:[%s113] sm:$0xff]
  %s115 = scalar_lea.vmem %s1, 272
  %116 = vst [vmem:[%s115] sm:$0xff] %v114
  %s117 = scalar_lea.vmem %s0, 720
  %v118 = vld [vmem:[%s117] sm:$0xff]
  %s119 = scalar_lea.vmem %s1, 720
  %120 = vst [vmem:[%s119] sm:$0xff] %v118
  %s121 = scalar_lea.vmem %s0, 384
  %v122 = vld [vmem:[%s121] sm:$0xff]
  %s123 = scalar_lea.vmem %s1, 384
  %124 = vst [vmem:[%s123] sm:$0xff] %v122
  %s125 = scalar_lea.vmem %s0, 832
  %v126 = vld [vmem:[%s125] sm:$0xff]
  %s127 = scalar_lea.vmem %s1, 832
  %128 = vst [vmem:[%s127] sm:$0xff] %v126
  %s129 = scalar_lea.vmem %s0, 32
  %v130 = vld [vmem:[%s129] sm:$0xff]
  %s131 = scalar_lea.vmem %s1, 64
  %132 = vst [vmem:[%s131] sm:$0xff] %v130
  %s133 = scalar_lea.vmem %s0, 480
  %v134 = vld [vmem:[%s133] sm:$0xff]
  %s135 = scalar_lea.vmem %s1, 512
  %136 = vst [vmem:[%s135] sm:$0xff] %v134
  %s137 = scalar_lea.vmem %s0, 144
  %v138 = vld [vmem:[%s137] sm:$0xff]
  %s139 = scalar_lea.vmem %s1, 176
  %140 = vst [vmem:[%s139] sm:$0xff] %v138
  %s141 = scalar_lea.vmem %s0, 592
  %v142 = vld [vmem:[%s141] sm:$0xff]
  %s143 = scalar_lea.vmem %s1, 624
  %144 = vst [vmem:[%s143] sm:$0xff] %v142
  %s145 = scalar_lea.vmem %s0, 256
  %v146 = vld [vmem:[%s145] sm:$0xff]
  %s147 = scalar_lea.vmem %s1, 288
  %148 = vst [vmem:[%s147] sm:$0xff] %v146
  %s149 = scalar_lea.vmem %s0, 704
  %v150 = vld [vmem:[%s149] sm:$0xff]
  %s151 = scalar_lea.vmem %s1, 736
  %152 = vst [vmem:[%s151] sm:$0xff] %v150
  %s153 = scalar_lea.vmem %s0, 368
  %v154 = vld [vmem:[%s153] sm:$0xff]
  %s155 = scalar_lea.vmem %s1, 400
  %156 = vst [vmem:[%s155] sm:$0xff] %v154
  %s157 = scalar_lea.vmem %s0, 816
  %v158 = vld [vmem:[%s157] sm:$0xff]
  %s159 = scalar_lea.vmem %s1, 848
  %160 = vst [vmem:[%s159] sm:$0xff] %v158
  %s161 = scalar_lea.vmem %s0, 16
  %v162 = vld [vmem:[%s161] sm:$0xff]
  %s163 = scalar_lea.vmem %s1, 80
  %164 = vst [vmem:[%s163] sm:$0xff] %v162
  %s165 = scalar_lea.vmem %s0, 464
  %v166 = vld [vmem:[%s165] sm:$0xff]
  %s167 = scalar_lea.vmem %s1, 528
  %168 = vst [vmem:[%s167] sm:$0xff] %v166
  %s169 = scalar_lea.vmem %s0, 128
  %v170 = vld [vmem:[%s169] sm:$0xff]
  %s171 = scalar_lea.vmem %s1, 192
  %172 = vst [vmem:[%s171] sm:$0xff] %v170
  %s173 = scalar_lea.vmem %s0, 576
  %v174 = vld [vmem:[%s173] sm:$0xff]
  %s175 = scalar_lea.vmem %s1, 640
  %176 = vst [vmem:[%s175] sm:$0xff] %v174
  %s177 = scalar_lea.vmem %s0, 240
  %v178 = vld [vmem:[%s177] sm:$0xff]
  %s179 = scalar_lea.vmem %s1, 304
  %180 = vst [vmem:[%s179] sm:$0xff] %v178
  %s181 = scalar_lea.vmem %s0, 688
  %v182 = vld [vmem:[%s181] sm:$0xff]
  %s183 = scalar_lea.vmem %s1, 752
  %184 = vst [vmem:[%s183] sm:$0xff] %v182
  %s185 = scalar_lea.vmem %s0, 352
  %v186 = vld [vmem:[%s185] sm:$0xff]
  %s187 = scalar_lea.vmem %s1, 416
  %188 = vst [vmem:[%s187] sm:$0xff] %v186
  %s189 = scalar_lea.vmem %s0, 800
  %v190 = vld [vmem:[%s189] sm:$0xff]
  %s191 = scalar_lea.vmem %s1, 864
  %192 = vst [vmem:[%s191] sm:$0xff] %v190
  %v193 = vld [vmem:[%s0] sm:$0xff]
  %s194 = scalar_lea.vmem %s1, 96
  %195 = vst [vmem:[%s194] sm:$0xff] %v193
  %s196 = scalar_lea.vmem %s0, 448
  %v197 = vld [vmem:[%s196] sm:$0xff]
  %s198 = scalar_lea.vmem %s1, 544
  %199 = vst [vmem:[%s198] sm:$0xff] %v197
  %s200 = scalar_lea.vmem %s0, 112
  %v201 = vld [vmem:[%s200] sm:$0xff]
  %s202 = scalar_lea.vmem %s1, 208
  %203 = vst [vmem:[%s202] sm:$0xff] %v201
  %s204 = scalar_lea.vmem %s0, 560
  %v205 = vld [vmem:[%s204] sm:$0xff]
  %s206 = scalar_lea.vmem %s1, 656
  %207 = vst [vmem:[%s206] sm:$0xff] %v205
  %s208 = scalar_lea.vmem %s0, 224
  %v209 = vld [vmem:[%s208] sm:$0xff]
  %s210 = scalar_lea.vmem %s1, 320
  %211 = vst [vmem:[%s210] sm:$0xff] %v209
  %s212 = scalar_lea.vmem %s0, 672
  %v213 = vld [vmem:[%s212] sm:$0xff]
  %s214 = scalar_lea.vmem %s1, 768
  %215 = vst [vmem:[%s214] sm:$0xff] %v213
  %s216 = scalar_lea.vmem %s0, 336
  %v217 = vld [vmem:[%s216] sm:$0xff]
  %s218 = scalar_lea.vmem %s1, 432
  %219 = vst [vmem:[%s218] sm:$0xff] %v217
  %s220 = scalar_lea.vmem %s0, 784
  %v221 = vld [vmem:[%s220] sm:$0xff]
  %s222 = scalar_lea.vmem %s1, 880
  %223 = vst [vmem:[%s222] sm:$0xff] %v221
  %s224 = scalar_lea.vmem %s0, 104
  %v225 = vld [vmem:[%s224] sm:$0xff]
  %s226 = scalar_lea.vmem %s1, 8
  %227 = vst [vmem:[%s226] sm:$0xff] %v225
  %s228 = scalar_lea.vmem %s0, 552
  %v229 = vld [vmem:[%s228] sm:$0xff]
  %s230 = scalar_lea.vmem %s1, 456
  %231 = vst [vmem:[%s230] sm:$0xff] %v229
  %s232 = scalar_lea.vmem %s0, 216
  %v233 = vld [vmem:[%s232] sm:$0xff]
  %s234 = scalar_lea.vmem %s1, 120
  %235 = vst [vmem:[%s234] sm:$0xff] %v233
  %s236 = scalar_lea.vmem %s0, 664
  %v237 = vld [vmem:[%s236] sm:$0xff]
  %s238 = scalar_lea.vmem %s1, 568
  %239 = vst [vmem:[%s238] sm:$0xff] %v237
  %s240 = scalar_lea.vmem %s0, 328
  %v241 = vld [vmem:[%s240] sm:$0xff]
  %s242 = scalar_lea.vmem %s1, 232
  %243 = vst [vmem:[%s242] sm:$0xff] %v241
  %s244 = scalar_lea.vmem %s0, 776
  %v245 = vld [vmem:[%s244] sm:$0xff]
  %s246 = scalar_lea.vmem %s1, 680
  %247 = vst [vmem:[%s246] sm:$0xff] %v245
  %s248 = scalar_lea.vmem %s0, 440
  %v249 = vld [vmem:[%s248] sm:$0xff]
  %s250 = scalar_lea.vmem %s1, 344
  %251 = vst [vmem:[%s250] sm:$0xff] %v249
  %s252 = scalar_lea.vmem %s0, 888
  %v253 = vld [vmem:[%s252] sm:$0xff]
  %s254 = scalar_lea.vmem %s1, 792
  %255 = vst [vmem:[%s254] sm:$0xff] %v253
  %s256 = scalar_lea.vmem %s0, 88
  %v257 = vld [vmem:[%s256] sm:$0xff]
  %s258 = scalar_lea.vmem %s1, 24
  %259 = vst [vmem:[%s258] sm:$0xff] %v257
  %s260 = scalar_lea.vmem %s0, 536
  %v261 = vld [vmem:[%s260] sm:$0xff]
  %s262 = scalar_lea.vmem %s1, 472
  %263 = vst [vmem:[%s262] sm:$0xff] %v261
  %s264 = scalar_lea.vmem %s0, 200
  %v265 = vld [vmem:[%s264] sm:$0xff]
  %s266 = scalar_lea.vmem %s1, 136
  %267 = vst [vmem:[%s266] sm:$0xff] %v265
  %s268 = scalar_lea.vmem %s0, 648
  %v269 = vld [vmem:[%s268] sm:$0xff]
  %s270 = scalar_lea.vmem %s1, 584
  %271 = vst [vmem:[%s270] sm:$0xff] %v269
  %s272 = scalar_lea.vmem %s0, 312
  %v273 = vld [vmem:[%s272] sm:$0xff]
  %s274 = scalar_lea.vmem %s1, 248
  %275 = vst [vmem:[%s274] sm:$0xff] %v273
  %s276 = scalar_lea.vmem %s0, 760
  %v277 = vld [vmem:[%s276] sm:$0xff]
  %s278 = scalar_lea.vmem %s1, 696
  %279 = vst [vmem:[%s278] sm:$0xff] %v277
  %s280 = scalar_lea.vmem %s0, 424
  %v281 = vld [vmem:[%s280] sm:$0xff]
  %s282 = scalar_lea.vmem %s1, 360
  %283 = vst [vmem:[%s282] sm:$0xff] %v281
  %s284 = scalar_lea.vmem %s0, 872
  %v285 = vld [vmem:[%s284] sm:$0xff]
  %s286 = scalar_lea.vmem %s1, 808
  %287 = vst [vmem:[%s286] sm:$0xff] %v285
  %s288 = scalar_lea.vmem %s0, 72
  %v289 = vld [vmem:[%s288] sm:$0xff]
  %s290 = scalar_lea.vmem %s1, 40
  %291 = vst [vmem:[%s290] sm:$0xff] %v289
  %s292 = scalar_lea.vmem %s0, 520
  %v293 = vld [vmem:[%s292] sm:$0xff]
  %s294 = scalar_lea.vmem %s1, 488
  %295 = vst [vmem:[%s294] sm:$0xff] %v293
  %s296 = scalar_lea.vmem %s0, 184
  %v297 = vld [vmem:[%s296] sm:$0xff]
  %s298 = scalar_lea.vmem %s1, 152
  %299 = vst [vmem:[%s298] sm:$0xff] %v297
  %s300 = scalar_lea.vmem %s0, 632
  %v301 = vld [vmem:[%s300] sm:$0xff]
  %s302 = scalar_lea.vmem %s1, 600
  %303 = vst [vmem:[%s302] sm:$0xff] %v301
  %s304 = scalar_lea.vmem %s0, 296
  %v305 = vld [vmem:[%s304] sm:$0xff]
  %s306 = scalar_lea.vmem %s1, 264
  %307 = vst [vmem:[%s306] sm:$0xff] %v305
  %s308 = scalar_lea.vmem %s0, 744
  %v309 = vld [vmem:[%s308] sm:$0xff]
  %s310 = scalar_lea.vmem %s1, 712
  %311 = vst [vmem:[%s310] sm:$0xff] %v309
  %s312 = scalar_lea.vmem %s0, 408
  %v313 = vld [vmem:[%s312] sm:$0xff]
  %s314 = scalar_lea.vmem %s1, 376
  %315 = vst [vmem:[%s314] sm:$0xff] %v313
  %s316 = scalar_lea.vmem %s0, 856
  %v317 = vld [vmem:[%s316] sm:$0xff]
  %s318 = scalar_lea.vmem %s1, 824
  %319 = vst [vmem:[%s318] sm:$0xff] %v317
  %s320 = scalar_lea.vmem %s0, 56
  %v321 = vld [vmem:[%s320] sm:$0xff]
  %s322 = scalar_lea.vmem %s1, 56
  %323 = vst [vmem:[%s322] sm:$0xff] %v321
  %s324 = scalar_lea.vmem %s0, 504
  %v325 = vld [vmem:[%s324] sm:$0xff]
  %s326 = scalar_lea.vmem %s1, 504
  %327 = vst [vmem:[%s326] sm:$0xff] %v325
  %s328 = scalar_lea.vmem %s0, 168
  %v329 = vld [vmem:[%s328] sm:$0xff]
  %s330 = scalar_lea.vmem %s1, 168
  %331 = vst [vmem:[%s330] sm:$0xff] %v329
  %s332 = scalar_lea.vmem %s0, 616
  %v333 = vld [vmem:[%s332] sm:$0xff]
  %s334 = scalar_lea.vmem %s1, 616
  %335 = vst [vmem:[%s334] sm:$0xff] %v333
  %s336 = scalar_lea.vmem %s0, 280
  %v337 = vld [vmem:[%s336] sm:$0xff]
  %s338 = scalar_lea.vmem %s1, 280
  %339 = vst [vmem:[%s338] sm:$0xff] %v337
  %s340 = scalar_lea.vmem %s0, 728
  %v341 = vld [vmem:[%s340] sm:$0xff]
  %s342 = scalar_lea.vmem %s1, 728
  %343 = vst [vmem:[%s342] sm:$0xff] %v341
  %s344 = scalar_lea.vmem %s0, 392
  %v345 = vld [vmem:[%s344] sm:$0xff]
  %s346 = scalar_lea.vmem %s1, 392
  %347 = vst [vmem:[%s346] sm:$0xff] %v345
  %s348 = scalar_lea.vmem %s0, 840
  %v349 = vld [vmem:[%s348] sm:$0xff]
  %s350 = scalar_lea.vmem %s1, 840
  %351 = vst [vmem:[%s350] sm:$0xff] %v349
  %s352 = scalar_lea.vmem %s0, 40
  %v353 = vld [vmem:[%s352] sm:$0xff]
  %s354 = scalar_lea.vmem %s1, 72
  %355 = vst [vmem:[%s354] sm:$0xff] %v353
  %s356 = scalar_lea.vmem %s0, 488
  %v357 = vld [vmem:[%s356] sm:$0xff]
  %s358 = scalar_lea.vmem %s1, 520
  %359 = vst [vmem:[%s358] sm:$0xff] %v357
  %s360 = scalar_lea.vmem %s0, 152
  %v361 = vld [vmem:[%s360] sm:$0xff]
  %s362 = scalar_lea.vmem %s1, 184
  %363 = vst [vmem:[%s362] sm:$0xff] %v361
  %s364 = scalar_lea.vmem %s0, 600
  %v365 = vld [vmem:[%s364] sm:$0xff]
  %s366 = scalar_lea.vmem %s1, 632
  %367 = vst [vmem:[%s366] sm:$0xff] %v365
  %s368 = scalar_lea.vmem %s0, 264
  %v369 = vld [vmem:[%s368] sm:$0xff]
  %s370 = scalar_lea.vmem %s1, 296
  %371 = vst [vmem:[%s370] sm:$0xff] %v369
  %s372 = scalar_lea.vmem %s0, 712
  %v373 = vld [vmem:[%s372] sm:$0xff]
  %s374 = scalar_lea.vmem %s1, 744
  %375 = vst [vmem:[%s374] sm:$0xff] %v373
  %s376 = scalar_lea.vmem %s0, 376
  %v377 = vld [vmem:[%s376] sm:$0xff]
  %s378 = scalar_lea.vmem %s1, 408
  %379 = vst [vmem:[%s378] sm:$0xff] %v377
  %s380 = scalar_lea.vmem %s0, 824
  %v381 = vld [vmem:[%s380] sm:$0xff]
  %s382 = scalar_lea.vmem %s1, 856
  %383 = vst [vmem:[%s382] sm:$0xff] %v381
  %s384 = scalar_lea.vmem %s0, 24
  %v385 = vld [vmem:[%s384] sm:$0xff]
  %s386 = scalar_lea.vmem %s1, 88
  %387 = vst [vmem:[%s386] sm:$0xff] %v385
  %s388 = scalar_lea.vmem %s0, 472
  %v389 = vld [vmem:[%s388] sm:$0xff]
  %s390 = scalar_lea.vmem %s1, 536
  %391 = vst [vmem:[%s390] sm:$0xff] %v389
  %s392 = scalar_lea.vmem %s0, 136
  %v393 = vld [vmem:[%s392] sm:$0xff]
  %s394 = scalar_lea.vmem %s1, 200
  %395 = vst [vmem:[%s394] sm:$0xff] %v393
  %s396 = scalar_lea.vmem %s0, 584
  %v397 = vld [vmem:[%s396] sm:$0xff]
  %s398 = scalar_lea.vmem %s1, 648
  %399 = vst [vmem:[%s398] sm:$0xff] %v397
  %s400 = scalar_lea.vmem %s0, 248
  %v401 = vld [vmem:[%s400] sm:$0xff]
  %s402 = scalar_lea.vmem %s1, 312
  %403 = vst [vmem:[%s402] sm:$0xff] %v401
  %s404 = scalar_lea.vmem %s0, 696
  %v405 = vld [vmem:[%s404] sm:$0xff]
  %s406 = scalar_lea.vmem %s1, 760
  %407 = vst [vmem:[%s406] sm:$0xff] %v405
  %s408 = scalar_lea.vmem %s0, 360
  %v409 = vld [vmem:[%s408] sm:$0xff]
  %s410 = scalar_lea.vmem %s1, 424
  %411 = vst [vmem:[%s410] sm:$0xff] %v409
  %s412 = scalar_lea.vmem %s0, 808
  %v413 = vld [vmem:[%s412] sm:$0xff]
  %s414 = scalar_lea.vmem %s1, 872
  %415 = vst [vmem:[%s414] sm:$0xff] %v413
  %s416 = scalar_lea.vmem %s0, 8
  %v417 = vld [vmem:[%s416] sm:$0xff]
  %s418 = scalar_lea.vmem %s1, 104
  %419 = vst [vmem:[%s418] sm:$0xff] %v417
  %s420 = scalar_lea.vmem %s0, 456
  %v421 = vld [vmem:[%s420] sm:$0xff]
  %s422 = scalar_lea.vmem %s1, 552
  %423 = vst [vmem:[%s422] sm:$0xff] %v421
  %s424 = scalar_lea.vmem %s0, 120
  %v425 = vld [vmem:[%s424] sm:$0xff]
  %s426 = scalar_lea.vmem %s1, 216
  %427 = vst [vmem:[%s426] sm:$0xff] %v425
  %s428 = scalar_lea.vmem %s0, 568
  %v429 = vld [vmem:[%s428] sm:$0xff]
  %s430 = scalar_lea.vmem %s1, 664
  %431 = vst [vmem:[%s430] sm:$0xff] %v429
  %s432 = scalar_lea.vmem %s0, 232
  %v433 = vld [vmem:[%s432] sm:$0xff]
  %s434 = scalar_lea.vmem %s1, 328
  %435 = vst [vmem:[%s434] sm:$0xff] %v433
  %s436 = scalar_lea.vmem %s0, 680
  %v437 = vld [vmem:[%s436] sm:$0xff]
  %s438 = scalar_lea.vmem %s1, 776
  %439 = vst [vmem:[%s438] sm:$0xff] %v437
  %s440 = scalar_lea.vmem %s0, 344
  %v441 = vld [vmem:[%s440] sm:$0xff]
  %s442 = scalar_lea.vmem %s1, 440
  %443 = vst [vmem:[%s442] sm:$0xff] %v441
  %s444 = scalar_lea.vmem %s0, 792
  %v445 = vld [vmem:[%s444] sm:$0xff]
  %s446 = scalar_lea.vmem %s1, 888
  %447 = vst [vmem:[%s446] sm:$0xff] %v445

// kernel: fourier_block_forward.3
$region0: #{fourier_block_forward.3}
  #allocation0 [shape = 'u32[]', space=smem, size = 0x4, offset = 0x4, fixed_abs, tag = 'smem constant byte address 0x4 - core index']
  #allocation1 [shape = 'u32[144,128]{1,0:T(1,128)}', space=vmem, size = 0x12000, scoped, tag = 'internal scratch']
  %s0 = inlined_call_operand.vmem [shape: bf16[2,2,32,128], index: 0, kind: input, shape index: {}]
  %s1 = inlined_call_operand.vmem [shape: bf16[2,4,32,128], index: 1, kind: input, shape index: {}]
  %s2 = inlined_call_operand.vmem [shape: f32[4], index: 2, kind: input, shape index: {}]
  %s3 = inlined_call_operand.vmem [shape: f32[4], index: 3, kind: input, shape index: {}]
  %s4 = inlined_call_operand.vmem [shape: f32[2,4], index: 4, kind: input, shape index: {}]
  %s5 = inlined_call_operand.vmem [shape: f32[2], index: 5, kind: input, shape index: {}]
  %s6 = inlined_call_operand.vmem [shape: f32[2,2,32,128], index: 6, kind: output, shape index: {}]
  %s7 = sld [smem:[#allocation0]]
  $region73: #{fourier_block_forward.3} parent=0
    _
  %s9 = ssub.s32 1, %s7
  %s10 = scalar_select 0, %s9, %s7
  $region1: #{fourier_block_forward.3} parent=0
    #allocation2 [shape = 'u8[512]{0}', space=smem, size = 0x200, scoped, tag = 'input window, operand 2, single buffered']
    #allocation3 [shape = 's32[2]{0}', space=sflag, size = 0x8, scoped, tag = 'scoped memory for fourier_block_forward.3']
    #allocation4 [shape = 'u8[512]{0}', space=smem, size = 0x200, scoped, tag = 'input window, operand 3, single buffered']
    #allocation5 [shape = 's32[1]{0}', space=sflag, size = 0x4, scoped, tag = 'scoped memory for fourier_block_forward.3']
    #allocation6 [shape = 'u8[1024]{0}', space=smem, size = 0x400, scoped, tag = 'input window, operand 4, single buffered']
    #allocation7 [shape = 'u8[512]{0}', space=smem, size = 0x200, scoped, tag = 'input window, operand 5, single buffered']
    #allocation8 [shape = 's32[1]{0}', space=sflag, size = 0x4, scoped, tag = 'scoped memory for fourier_block_forward.3']
    %11 = vsyncpa [#allocation3], 0
    %12 = vsyncpa [#allocation5], 0
    %13 = vsyncpa [#allocation8], 0
    loop: start=0, step=1, limit=4
    $region2: #{fourier_block_forward.3} parent=1 // loop_pre_header
      _
    $region3: #{fourier_block_forward.3} parent=1 // loop_header
      %s15 = sphi 0, %s19
      %p16 = scmp.ge.s32.totalorder %s15, 4
      %s25 = sphi 0, %s27
      %s28 = sphi 0, %s25
      %s29 = sphi 0, %s28
      %s45 = sphi 0, %s29
      %s51 = sphi 0, %s53
      %s54 = sphi 0, %s51
      %s55 = sphi 0, %s54
      %s71 = sphi 0, %s55
      %s75 = sphi 0, %s75
      %s77 = sphi 0, %s75
      %s78 = sphi 0, %s77
      %s92 = sphi 0, %s78
      %s96 = sphi 0, %s96
      %s98 = sphi 0, %s96
      %s99 = sphi 0, %s98
      %s113 = sphi 0, %s99
      %s117 = sphi 0, %s117
      %s119 = sphi 0, %s117
      %s120 = sphi 0, %s119
      %s134 = sphi 0, %s120
      %s138 = sphi 0, %s138
      %s140 = sphi 0, %s138
      %s141 = sphi 0, %s140
      %s155 = sphi 0, %s141
      %s161 = sphi 0, %s163
      %s164 = sphi 0, %s161
      %s165 = sphi 0, %s164
      %s181 = sphi 0, %s165
    $region4: #{fourier_block_forward.3} parent=1 // loop_header_branch
      %18 = sbr.rel (%p16) target = $region8
    $region5: #{fourier_block_forward.3} parent=1 // loop_body
      %s20 = ssub.s32 %s15, 1
      %s21 = ssub.s32 %s15, 2
      %s22 = sadd.s32 %s15, 1
      %s23 = ssub.s32 %s15, %s22
      %p24 = scmp.eq.s32.totalorder %s23, 0
      %s26 = sadd.s32 %s25, 1
      %s27 = scalar_select %p24, %s25, %s26
      %p30 = pneg %p24
      %p31 = scmp.eq.s32.totalorder %s15, 1
      %p32 = por %p30, %p31
      %p33 = scmp.ne.s32.totalorder %s25, %s28
      %p34 = scmp.eq.s32.totalorder %s15, 0
      %p35 = por %p33, %p34
      %p36 = scmp.ne.s32.totalorder %s25, %s28
      %p37 = scmp.eq.s32.totalorder %s20, 1
      %p38 = por %p36, %p37
      %p39 = scmp.ne.s32.totalorder %s28, %s29
      %p40 = scmp.eq.s32.totalorder %s20, 0
      %p41 = por %p39, %p40
      %p42 = scmp.ne.s32.totalorder %s28, %s29
      %p43 = scmp.eq.s32.totalorder %s21, 1
      %p44 = por %p42, %p43
      %p46 = scmp.ne.s32.totalorder %s29, %s45
      %p47 = scmp.eq.s32.totalorder %s21, 0
      %p48 = por %p46, %p47
      %s49 = ssub.s32 %s15, %s22
      %p50 = scmp.eq.s32.totalorder %s49, 0
      %s52 = sadd.s32 %s51, 1
      %s53 = scalar_select %p50, %s51, %s52
      %p56 = pneg %p50
      %p57 = scmp.eq.s32.totalorder %s15, 1
      %p58 = por %p56, %p57
      %p59 = scmp.ne.s32.totalorder %s51, %s54
      %p60 = scmp.eq.s32.totalorder %s15, 0
      %p61 = por %p59, %p60
      %p62 = scmp.ne.s32.totalorder %s51, %s54
      %p63 = scmp.eq.s32.totalorder %s20, 1
      %p64 = por %p62, %p63
      %p65 = scmp.ne.s32.totalorder %s54, %s55
      %p66 = scmp.eq.s32.totalorder %s20, 0
      %p67 = por %p65, %p66
      %p68 = scmp.ne.s32.totalorder %s54, %s55
      %p69 = scmp.eq.s32.totalorder %s21, 1
      %p70 = por %p68, %p69
      %p72 = scmp.ne.s32.totalorder %s55, %s71
      %p73 = scmp.eq.s32.totalorder %s21, 0
      %p74 = por %p72, %p73
      %s76 = sadd.s32 %s75, 1
      %p79 = scmp.eq.s32.totalorder %s15, 1
      %p80 = scmp.ne.s32.totalorder %s75, %s77
      %p81 = scmp.eq.s32.totalorder %s15, 0
      %p82 = por %p80, %p81
      %p83 = scmp.ne.s32.totalorder %s75, %s77
      %p84 = scmp.eq.s32.totalorder %s20, 1
      %p85 = por %p83, %p84
      %p86 = scmp.ne.s32.totalorder %s77, %s78
      %p87 = scmp.eq.s32.totalorder %s20, 0
      %p88 = por %p86, %p87
      %p89 = scmp.ne.s32.totalorder %s77, %s78
      %p90 = scmp.eq.s32.totalorder %s21, 1
      %p91 = por %p89, %p90
      %p93 = scmp.ne.s32.totalorder %s78, %s92
      %p94 = scmp.eq.s32.totalorder %s21, 0
      %p95 = por %p93, %p94
      %s97 = sadd.s32 %s96, 1
      %p100 = scmp.eq.s32.totalorder %s15, 1
      %p101 = scmp.ne.s32.totalorder %s96, %s98
      %p102 = scmp.eq.s32.totalorder %s15, 0
      %p103 = por %p101, %p102
      %p104 = scmp.ne.s32.totalorder %s96, %s98
      %p105 = scmp.eq.s32.totalorder %s20, 1
      %p106 = por %p104, %p105
      %p107 = scmp.ne.s32.totalorder %s98, %s99
      %p108 = scmp.eq.s32.totalorder %s20, 0
      %p109 = por %p107, %p108
      %p110 = scmp.ne.s32.totalorder %s98, %s99
      %p111 = scmp.eq.s32.totalorder %s21, 1
      %p112 = por %p110, %p111
      %p114 = scmp.ne.s32.totalorder %s99, %s113
      %p115 = scmp.eq.s32.totalorder %s21, 0
      %p116 = por %p114, %p115
      %s118 = sadd.s32 %s117, 1
      %p121 = scmp.eq.s32.totalorder %s15, 1
      %p122 = scmp.ne.s32.totalorder %s117, %s119
      %p123 = scmp.eq.s32.totalorder %s15, 0
      %p124 = por %p122, %p123
      %p125 = scmp.ne.s32.totalorder %s117, %s119
      %p126 = scmp.eq.s32.totalorder %s20, 1
      %p127 = por %p125, %p126
      %p128 = scmp.ne.s32.totalorder %s119, %s120
      %p129 = scmp.eq.s32.totalorder %s20, 0
      %p130 = por %p128, %p129
      %p131 = scmp.ne.s32.totalorder %s119, %s120
      %p132 = scmp.eq.s32.totalorder %s21, 1
      %p133 = por %p131, %p132
      %p135 = scmp.ne.s32.totalorder %s120, %s134
      %p136 = scmp.eq.s32.totalorder %s21, 0
      %p137 = por %p135, %p136
      %s139 = sadd.s32 %s138, 1
      %p142 = scmp.eq.s32.totalorder %s15, 1
      %p143 = scmp.ne.s32.totalorder %s138, %s140
      %p144 = scmp.eq.s32.totalorder %s15, 0
      %p145 = por %p143, %p144
      %p146 = scmp.ne.s32.totalorder %s138, %s140
      %p147 = scmp.eq.s32.totalorder %s20, 1
      %p148 = por %p146, %p147
      %p149 = scmp.ne.s32.totalorder %s140, %s141
      %p150 = scmp.eq.s32.totalorder %s20, 0
      %p151 = por %p149, %p150
      %p152 = scmp.ne.s32.totalorder %s140, %s141
      %p153 = scmp.eq.s32.totalorder %s21, 1
      %p154 = por %p152, %p153
      %p156 = scmp.ne.s32.totalorder %s141, %s155
      %p157 = scmp.eq.s32.totalorder %s21, 0
      %p158 = por %p156, %p157
      %s159 = ssub.s32 %s15, %s22
      %p160 = scmp.eq.s32.totalorder %s159, 0
      %s162 = sadd.s32 %s161, 1
      %s163 = scalar_select %p160, %s161, %s162
      %p166 = pneg %p160
      %p167 = scmp.eq.s32.totalorder %s15, 1
      %p168 = por %p166, %p167
      %p169 = scmp.ne.s32.totalorder %s161, %s164
      %p170 = scmp.eq.s32.totalorder %s15, 0
      %p171 = por %p169, %p170
      %p172 = scmp.ne.s32.totalorder %s161, %s164
      %p173 = scmp.eq.s32.totalorder %s20, 1
      %p174 = por %p172, %p173
      %p175 = scmp.ne.s32.totalorder %s164, %s165
      %p176 = scmp.eq.s32.totalorder %s20, 0
      %p177 = por %p175, %p176
      %p178 = scmp.ne.s32.totalorder %s164, %s165
      %p179 = scmp.eq.s32.totalorder %s21, 1
      %p180 = por %p178, %p179
      %p182 = scmp.ne.s32.totalorder %s165, %s181
      %p183 = scmp.eq.s32.totalorder %s21, 0
      %p184 = por %p182, %p183
      %p185 = scmp.le.s32.totalorder 1, %s15
      %p186 = scmp.lt.s32.totalorder %s15, 3
      %p187 = pnand %p185, %p186
      %p188 = pneg %p187
      // Predicated region
      $region9: #{fourier_block_forward.3} parent=5 // pred_check
        _
      $region10: #{fourier_block_forward.3} parent=5 // pred_check_branch
        %190 = sbr.rel (%p187) target = $region12
      $region11: #{fourier_block_forward.3} parent=5 // pred_region
        %s191 = ssub.s32 %s15, 1
        // Predicated region
        $region13: #{fourier_block_forward.3} parent=11 // pred_check
          %p192 = pneg %p88
        $region14: #{fourier_block_forward.3} parent=11 // pred_check_branch
          %194 = sbr.rel (%p192) target = $region16
        $region15: #{fourier_block_forward.3} parent=11 // pred_region
          %s196 = ssub.s32 16, 16
          %197 = vsyncadd [#allocation3], %s196
          %s199 = sshll.u32 %s2, 4
          %s200 = int_to_ptr.vmem [resolvable:$true] %s199
          %202 = dma.vmem_to_smem %s200, 16, [#allocation2], [#allocation3]
        $region16: #{fourier_block_forward.3} parent=11 // pred_fallthru
          _
        // Predicated region
        $region17: #{fourier_block_forward.3} parent=11 // pred_check
          %p203 = pneg %p109
        $region18: #{fourier_block_forward.3} parent=11 // pred_check_branch
          %205 = sbr.rel (%p203) target = $region20
        $region19: #{fourier_block_forward.3} parent=11 // pred_region
          %s207 = ssub.s32 16, 16
          %208 = vsyncadd [#allocation5], %s207
          %s210 = sshll.u32 %s3, 4
          %s211 = int_to_ptr.vmem [resolvable:$true] %s210
          %213 = dma.vmem_to_smem %s211, 16, [#allocation4], [#allocation5]
        $region20: #{fourier_block_forward.3} parent=11 // pred_fallthru
          _
        // Predicated region
        $region21: #{fourier_block_forward.3} parent=11 // pred_check
          %p214 = pneg %p130
        $region22: #{fourier_block_forward.3} parent=11 // pred_check_branch
          %216 = sbr.rel (%p214) target = $region24
        $region23: #{fourier_block_forward.3} parent=11 // pred_region
          %s218 = ssub.s32 32, 32
          %219 = vsyncadd [#allocation5], %s218
          %s221 = sshll.u32 %s4, 4
          %s222 = int_to_ptr.vmem [resolvable:$true] %s221
          %224 = dma.vmem_to_smem %s222, 32, [#allocation6], [#allocation5]
        $region24: #{fourier_block_forward.3} parent=11 // pred_fallthru
          _
        // Predicated region
        $region25: #{fourier_block_forward.3} parent=11 // pred_check
          %p225 = pneg %p151
        $region26: #{fourier_block_forward.3} parent=11 // pred_check_branch
          %227 = sbr.rel (%p225) target = $region28
        $region27: #{fourier_block_forward.3} parent=11 // pred_region
          %s229 = ssub.s32 16, 16
          %230 = vsyncadd [#allocation8], %s229
          %s232 = sshll.u32 %s5, 4
          %s233 = int_to_ptr.vmem [resolvable:$true] %s232
          %235 = dma.vmem_to_smem %s233, 16, [#allocation7], [#allocation8]
        $region28: #{fourier_block_forward.3} parent=11 // pred_fallthru
          _
      $region12: #{fourier_block_forward.3} parent=5 // pred_fallthru
        _
      %p236 = scmp.lt.s32.totalorder %s15, 2
      // Predicated region
      $region29: #{fourier_block_forward.3} parent=5 // pred_check
        %p237 = pneg %p236
      $region30: #{fourier_block_forward.3} parent=5 // pred_check_branch
        %239 = sbr.rel (%p237) target = $region32
      $region31: #{fourier_block_forward.3} parent=5 // pred_region
        // Predicated region
        $region33: #{fourier_block_forward.3} parent=31 // pred_check
          %p240 = pneg %p35
        $region34: #{fourier_block_forward.3} parent=31 // pred_check_branch
          %242 = sbr.rel (%p240) target = $region36
        $region35: #{fourier_block_forward.3} parent=31 // pred_region
          %p243 = scmp.lt.s32.totalorder %s15, 1
          %s244 = scalar_select %p243, %s15, 1
          %s245 = smul.addr %s244, 8
          %s246 = smul.addr %s245, 4
          %s247 = scalar_lea.vmem %s0, %s246
        $region36: #{fourier_block_forward.3} parent=31 // pred_fallthru
          _
        // Predicated region
        $region37: #{fourier_block_forward.3} parent=31 // pred_check
          %p248 = pneg %p61
        $region38: #{fourier_block_forward.3} parent=31 // pred_check_branch
          %250 = sbr.rel (%p248) target = $region40
        $region39: #{fourier_block_forward.3} parent=31 // pred_region
          %p251 = scmp.lt.s32.totalorder %s15, 1
          %s252 = scalar_select %p251, %s15, 1
          %s253 = smul.addr %s252, 16
          %s254 = smul.addr %s253, 4
          %s255 = scalar_lea.vmem %s1, %s254
        $region40: #{fourier_block_forward.3} parent=31 // pred_fallthru
          _
      $region32: #{fourier_block_forward.3} parent=5 // pred_fallthru
        _
      %p256 = scmp.le.s32.totalorder 1, %s15
      %p257 = scmp.lt.s32.totalorder %s15, 3
      %p258 = pnand %p256, %p257
      %p259 = pneg %p258
      // Predicated region
      $region41: #{fourier_block_forward.3} parent=5 // pred_check
        _
      $region42: #{fourier_block_forward.3} parent=5 // pred_check_branch
        %261 = sbr.rel (%p258) target = $region44
      $region43: #{fourier_block_forward.3} parent=5 // pred_region
        %s262 = ssub.s32 %s15, 1
        // Predicated region
        $region45: #{fourier_block_forward.3} parent=43 // pred_check
          %p263 = pneg %p88
        $region46: #{fourier_block_forward.3} parent=43 // pred_check_branch
          %265 = sbr.rel (%p263) target = $region48
        $region47: #{fourier_block_forward.3} parent=43 // pred_region
          %266 = dma.done [#allocation3], 16
        $region48: #{fourier_block_forward.3} parent=43 // pred_fallthru
          _
        // Predicated region
        $region49: #{fourier_block_forward.3} parent=43 // pred_check
          %p267 = pneg %p109
        $region50: #{fourier_block_forward.3} parent=43 // pred_check_branch
          %269 = sbr.rel (%p267) target = $region52
        $region51: #{fourier_block_forward.3} parent=43 // pred_region
          %270 = dma.done [#allocation5], 16
        $region52: #{fourier_block_forward.3} parent=43 // pred_fallthru
          _
        // Predicated region
        $region53: #{fourier_block_forward.3} parent=43 // pred_check
          %p271 = pneg %p130
        $region54: #{fourier_block_forward.3} parent=43 // pred_check_branch
          %273 = sbr.rel (%p271) target = $region56
        $region55: #{fourier_block_forward.3} parent=43 // pred_region
          %274 = dma.done [#allocation5], 32
        $region56: #{fourier_block_forward.3} parent=43 // pred_fallthru
          _
        // Predicated region
        $region57: #{fourier_block_forward.3} parent=43 // pred_check
          %p275 = pneg %p151
        $region58: #{fourier_block_forward.3} parent=43 // pred_check_branch
          %277 = sbr.rel (%p275) target = $region60
        $region59: #{fourier_block_forward.3} parent=43 // pred_region
          %278 = dma.done [#allocation8], 16
        $region60: #{fourier_block_forward.3} parent=43 // pred_fallthru
          _
        %279 = sfence
        %p280 = scmp.lt.s32.totalorder %s20, 1
        %s281 = scalar_select %p280, %s20, 1
        %s282 = smul.addr %s281, 8
        %s283 = smul.addr %s282, 4
        %s284 = scalar_lea.vmem %s0, %s283
        %p285 = pneg %p41
        %p286 = pneg %p38
        %p287 = scmp.lt.s32.totalorder %s20, 1
        %s288 = scalar_select %p287, %s20, 1
        %s289 = smul.addr %s288, 16
        %s290 = smul.addr %s289, 4
        %s291 = scalar_lea.vmem %s1, %s290
        %p292 = pneg %p67
        %p293 = pneg %p64
        %p294 = pneg %p88
        %p295 = pneg %p85
        %p296 = pneg %p109
        %p297 = pneg %p106
        %p298 = pneg %p130
        %p299 = pneg %p127
        %p300 = pneg %p151
        %p301 = pneg %p148
        %p302 = pneg %p177
        %p303 = pneg %p174
        %p304 = scmp.lt.s32.totalorder %s20, 1
        %s305 = scalar_select %p304, %s20, 1
        %s306 = smul.addr %s305, 8
        %s307 = smul.addr %s306, 8
        %s308 = scalar_lea.vmem %s6, %s307
        %p309 = scmp.lt.s32.totalorder %s20, 1
        %s310 = scalar_select %p309, %s20, 1
        %s311 = smul.addr %s310, 8
        %s312 = smul.addr %s311, 4
        %s313 = scalar_lea.vmem %s0, %s312
        %p314 = scmp.lt.s32.totalorder %s20, 1
        %s315 = scalar_select %p314, %s20, 1
        %s316 = smul.addr %s315, 16
        %s317 = smul.addr %s316, 4
        %s318 = scalar_lea.vmem %s1, %s317
        %p319 = scmp.lt.s32.totalorder %s20, 1
        %s320 = scalar_select %p319, %s20, 1
        %s321 = smul.addr %s320, 8
        %s322 = smul.addr %s321, 8
        %s323 = scalar_lea.vmem %s6, %s322
        %v324 = vld [vmem:[%s313] sm:$0xf]
        %v325 = vld [vmem:[%s313 + $0x4] sm:$0xf]
        %v326 = vld [vmem:[%s313 + $0x8] sm:$0xf]
        %v327 = vld [vmem:[%s313 + $0xc] sm:$0xf]
        %v328 = vld [vmem:[%s313 + $0x10] sm:$0xf]
        %v329 = vld [vmem:[%s313 + $0x14] sm:$0xf]
        %v330 = vld [vmem:[%s313 + $0x18] sm:$0xf]
        %v331 = vld [vmem:[%s313 + $0x1c] sm:$0xf]
        %v332 = vunpack.c.l.bf16 %v324
        %v333 = vunpack.c.l.bf16 %v325
        %v334 = vunpack.c.l.bf16 %v326
        %v335 = vunpack.c.l.bf16 %v327
        %v336 = vunpack.c.l.bf16 %v328
        %v337 = vunpack.c.l.bf16 %v329
        %v338 = vunpack.c.l.bf16 %v330
        %v339 = vunpack.c.l.bf16 %v331
        %s340 = sld [smem:[#allocation2]]
        %v341 = vstv %s340
        %v342 = vmul.f32 %v332, %v341
        %v343 = vmul.f32 %v333, %v341
        %v344 = vmul.f32 %v334, %v341
        %v345 = vmul.f32 %v335, %v341
        %s346 = sld [smem:[#allocation4]]
        %v347 = vstv %s346
        %v348 = vadd.f32 %v342, %v347
        %v349 = vadd.f32 %v343, %v347
        %v350 = vadd.f32 %v344, %v347
        %v351 = vadd.f32 %v345, %v347
        %v352 = vld [vmem:[%s318] sm:$0xf]
        %v353 = vld [vmem:[%s318 + $0x4] sm:$0xf]
        %v354 = vld [vmem:[%s318 + $0x8] sm:$0xf]
        %v355 = vld [vmem:[%s318 + $0xc] sm:$0xf]
        %v356 = vunpack.c.l.bf16 %v352
        %v357 = vunpack.c.l.bf16 %v353
        %v358 = vunpack.c.l.bf16 %v354
        %v359 = vunpack.c.l.bf16 %v355
        %v360 = vadd.f32 %v348, %v356
        %v361 = vadd.f32 %v349, %v357
        %v362 = vadd.f32 %v350, %v358
        %v363 = vadd.f32 %v351, %v359
        %v364 = vadd.f32 %v360, %v361
        %v365 = vadd.f32 %v364, %v362
        %v366 = vadd.f32 %v365, %v363
        %367 = vadd.xlane.f32.xlu0 %v366
        %v368 = vpop.xlane.xlu0 %367
        %v369 = vrot.slane %v368, 4
        %v370 = vadd.f32 %v368, %v369
        %v371 = vrot.slane %v370, 2
        %v372 = vadd.f32 %v370, %v371
        %v373 = vrot.slane %v372, 1
        %v374 = vadd.f32 %v372, %v373
        %s375 = vtos %v374
        %v376 = vstv %s375
        %v377 = vmul.f32 %v376, 0.00024414063
        %v378 = vmul.f32 %v360, %v360
        %v379 = vmul.f32 %v361, %v361
        %v380 = vmul.f32 %v362, %v362
        %v381 = vmul.f32 %v363, %v363
        %v382 = vadd.f32 %v378, %v379
        %v383 = vadd.f32 %v382, %v380
        %v384 = vadd.f32 %v383, %v381
        %385 = vadd.xlane.f32.xlu0 %v384
        %v386 = vpop.xlane.xlu0 %385
        %v387 = vrot.slane %v386, 4
        %v388 = vadd.f32 %v386, %v387
        %v389 = vrot.slane %v388, 2
        %v390 = vadd.f32 %v388, %v389
        %v391 = vrot.slane %v390, 1
        %v392 = vadd.f32 %v390, %v391
        %s393 = vtos %v392
        %v394 = vstv %s393
        %v395 = vmul.f32 %v394, 0.00024414063
        %v396 = vmul.f32 %v377, %v377
        %v397 = vsub.f32 %v395, %v396
        %v398 = vmax.f32 %v397, 0.0
        %v399 = vsub.f32 %v360, %v377
        %v400 = vsub.f32 %v361, %v377
        %v401 = vsub.f32 %v362, %v377
        %v402 = vsub.f32 %v363, %v377
        %v403 = vadd.f32 %v398, 1e-05
        %v404 = vrsqrt.pop %v403
        %v405 = vmul.f32 %v399, %v404
        %v406 = vmul.f32 %v400, %v404
        %v407 = vmul.f32 %v401, %v404
        %v408 = vmul.f32 %v402, %v404
        %v409 = vmul.f32 %v405, 0.5
        %v410 = vmul.f32 %v406, 0.5
        %v411 = vmul.f32 %v407, 0.5
        %v412 = vmul.f32 %v408, 0.5
        %v413 = vmul.f32 %v405, 0.044715
        %v414 = vmul.f32 %v406, 0.044715
        %v415 = vmul.f32 %v407, 0.044715
        %v416 = vmul.f32 %v408, 0.044715
        %v417 = vmul.f32 %v413, %v405
        %v418 = vmul.f32 %v414, %v406
        %v419 = vmul.f32 %v415, %v407
        %v420 = vmul.f32 %v416, %v408
        %v421 = vmul.f32 %v417, %v405
        %v422 = vmul.f32 %v418, %v406
        %v423 = vmul.f32 %v419, %v407
        %v424 = vmul.f32 %v420, %v408
        %v425 = vadd.f32 %v405, %v421
        %v426 = vadd.f32 %v406, %v422
        %v427 = vadd.f32 %v407, %v423
        %v428 = vadd.f32 %v408, %v424
        %v429 = vmul.f32 %v425, 0.7978846
        %v430 = vmul.f32 %v426, 0.7978846
        %v431 = vmul.f32 %v427, 0.7978846
        %v432 = vmul.f32 %v428, 0.7978846
        %v433 = vtanh.pop %v429
        %v434 = vtanh.pop %v430
        %v435 = vtanh.pop %v431
        %v436 = vtanh.pop %v432
        %v437 = vadd.f32 %v433, 1.0
        %v438 = vadd.f32 %v434, 1.0
        %v439 = vadd.f32 %v435, 1.0
        %v440 = vadd.f32 %v436, 1.0
        %v441 = vmul.f32 %v409, %v437
        %v442 = vmul.f32 %v410, %v438
        %v443 = vmul.f32 %v411, %v439
        %v444 = vmul.f32 %v412, %v440
        %s445 = sld [smem:[#allocation2 + $0x1]]
        %v446 = vstv %s445
        %v447 = vmul.f32 %v332, %v446
        %v448 = vmul.f32 %v333, %v446
        %v449 = vmul.f32 %v334, %v446
        %v450 = vmul.f32 %v335, %v446
        %s451 = sld [smem:[#allocation4 + $0x1]]
        %v452 = vstv %s451
        %v453 = vadd.f32 %v447, %v452
        %v454 = vadd.f32 %v448, %v452
        %v455 = vadd.f32 %v449, %v452
        %v456 = vadd.f32 %v450, %v452
        %s457 = scalar_lea.vmem %s318, 16
        %v458 = vld [vmem:[%s457] sm:$0xf]
        %v459 = vld [vmem:[%s457 + $0x4] sm:$0xf]
        %v460 = vld [vmem:[%s457 + $0x8] sm:$0xf]
        %v461 = vld [vmem:[%s457 + $0xc] sm:$0xf]
        %v462 = vunpack.c.l.bf16 %v458
        %v463 = vunpack.c.l.bf16 %v459
        %v464 = vunpack.c.l.bf16 %v460
        %v465 = vunpack.c.l.bf16 %v461
        %v466 = vadd.f32 %v453, %v462
        %v467 = vadd.f32 %v454, %v463
        %v468 = vadd.f32 %v455, %v464
        %v469 = vadd.f32 %v456, %v465
        %v470 = vadd.f32 %v466, %v467
        %v471 = vadd.f32 %v470, %v468
        %v472 = vadd.f32 %v471, %v469
        %473 = vadd.xlane.f32.xlu0 %v472
        %v474 = vpop.xlane.xlu0 %473
        %v475 = vrot.slane %v474, 4
        %v476 = vadd.f32 %v474, %v475
        %v477 = vrot.slane %v476, 2
        %v478 = vadd.f32 %v476, %v477
        %v479 = vrot.slane %v478, 1
        %v480 = vadd.f32 %v478, %v479
        %s481 = vtos %v480
        %v482 = vstv %s481
        %v483 = vmul.f32 %v482, 0.00024414063
        %v484 = vmul.f32 %v466, %v466
        %v485 = vmul.f32 %v467, %v467
        %v486 = vmul.f32 %v468, %v468
        %v487 = vmul.f32 %v469, %v469
        %v488 = vadd.f32 %v484, %v485
        %v489 = vadd.f32 %v488, %v486
        %v490 = vadd.f32 %v489, %v487
        %491 = vadd.xlane.f32.xlu0 %v490
        %v492 = vpop.xlane.xlu0 %491
        %v493 = vrot.slane %v492, 4
        %v494 = vadd.f32 %v492, %v493
        %v495 = vrot.slane %v494, 2
        %v496 = vadd.f32 %v494, %v495
        %v497 = vrot.slane %v496, 1
        %v498 = vadd.f32 %v496, %v497
        %s499 = vtos %v498
        %v500 = vstv %s499
        %v501 = vmul.f32 %v500, 0.00024414063
        %v502 = vmul.f32 %v483, %v483
        %v503 = vsub.f32 %v501, %v502
        %v504 = vmax.f32 %v503, 0.0
        %v505 = vsub.f32 %v466, %v483
        %v506 = vsub.f32 %v467, %v483
        %v507 = vsub.f32 %v468, %v483
        %v508 = vsub.f32 %v469, %v483
        %v509 = vadd.f32 %v504, 1e-05
        %v510 = vrsqrt.pop %v509
        %v511 = vmul.f32 %v505, %v510
        %v512 = vmul.f32 %v506, %v510
        %v513 = vmul.f32 %v507, %v510
        %v514 = vmul.f32 %v508, %v510
        %v515 = vmul.f32 %v511, 0.5
        %v516 = vmul.f32 %v512, 0.5
        %v517 = vmul.f32 %v513, 0.5
        %v518 = vmul.f32 %v514, 0.5
        %v519 = vmul.f32 %v511, 0.044715
        %v520 = vmul.f32 %v512, 0.044715
        %v521 = vmul.f32 %v513, 0.044715
        %v522 = vmul.f32 %v514, 0.044715
        %v523 = vmul.f32 %v519, %v511
        %v524 = vmul.f32 %v520, %v512
        %v525 = vmul.f32 %v521, %v513
        %v526 = vmul.f32 %v522, %v514
        %v527 = vmul.f32 %v523, %v511
        %v528 = vmul.f32 %v524, %v512
        %v529 = vmul.f32 %v525, %v513
        %v530 = vmul.f32 %v526, %v514
        %v531 = vadd.f32 %v511, %v527
        %v532 = vadd.f32 %v512, %v528
        %v533 = vadd.f32 %v513, %v529
        %v534 = vadd.f32 %v514, %v530
        %v535 = vmul.f32 %v531, 0.7978846
        %v536 = vmul.f32 %v532, 0.7978846
        %v537 = vmul.f32 %v533, 0.7978846
        %v538 = vmul.f32 %v534, 0.7978846
        %v539 = vtanh.pop %v535
        %v540 = vtanh.pop %v536
        %v541 = vtanh.pop %v537
        %v542 = vtanh.pop %v538
        %v543 = vadd.f32 %v539, 1.0
        %v544 = vadd.f32 %v540, 1.0
        %v545 = vadd.f32 %v541, 1.0
        %v546 = vadd.f32 %v542, 1.0
        %v547 = vmul.f32 %v515, %v543
        %v548 = vmul.f32 %v516, %v544
        %v549 = vmul.f32 %v517, %v545
        %v550 = vmul.f32 %v518, %v546
        %s551 = sld [smem:[#allocation2 + $0x2]]
        %v552 = vstv %s551
        %v553 = vmul.f32 %v336, %v552
        %v554 = vmul.f32 %v337, %v552
        %v555 = vmul.f32 %v338, %v552
        %v556 = vmul.f32 %v339, %v552
        %s557 = sld [smem:[#allocation4 + $0x2]]
        %v558 = vstv %s557
        %v559 = vadd.f32 %v553, %v558
        %v560 = vadd.f32 %v554, %v558
        %v561 = vadd.f32 %v555, %v558
        %v562 = vadd.f32 %v556, %v558
        %s563 = scalar_lea.vmem %s318, 32
        %v564 = vld [vmem:[%s563] sm:$0xf]
        %v565 = vld [vmem:[%s563 + $0x4] sm:$0xf]
        %v566 = vld [vmem:[%s563 + $0x8] sm:$0xf]
        %v567 = vld [vmem:[%s563 + $0xc] sm:$0xf]
        %v568 = vunpack.c.l.bf16 %v564
        %v569 = vunpack.c.l.bf16 %v565
        %v570 = vunpack.c.l.bf16 %v566
        %v571 = vunpack.c.l.bf16 %v567
        %v572 = vadd.f32 %v559, %v568
        %v573 = vadd.f32 %v560, %v569
        %v574 = vadd.f32 %v561, %v570
        %v575 = vadd.f32 %v562, %v571
        %v576 = vadd.f32 %v572, %v573
        %v577 = vadd.f32 %v576, %v574
        %v578 = vadd.f32 %v577, %v575
        %579 = vadd.xlane.f32.xlu0 %v578
        %v580 = vpop.xlane.xlu0 %579
        %v581 = vrot.slane %v580, 4
        %v582 = vadd.f32 %v580, %v581
        %v583 = vrot.slane %v582, 2
        %v584 = vadd.f32 %v582, %v583
        %v585 = vrot.slane %v584, 1
        %v586 = vadd.f32 %v584, %v585
        %s587 = vtos %v586
        %v588 = vstv %s587
        %v589 = vmul.f32 %v588, 0.00024414063
        %v590 = vmul.f32 %v572, %v572
        %v591 = vmul.f32 %v573, %v573
        %v592 = vmul.f32 %v574, %v574
        %v593 = vmul.f32 %v575, %v575
        %v594 = vadd.f32 %v590, %v591
        %v595 = vadd.f32 %v594, %v592
        %v596 = vadd.f32 %v595, %v593
        %597 = vadd.xlane.f32.xlu0 %v596
        %v598 = vpop.xlane.xlu0 %597
        %v599 = vrot.slane %v598, 4
        %v600 = vadd.f32 %v598, %v599
        %v601 = vrot.slane %v600, 2
        %v602 = vadd.f32 %v600, %v601
        %v603 = vrot.slane %v602, 1
        %v604 = vadd.f32 %v602, %v603
        %s605 = vtos %v604
        %v606 = vstv %s605
        %v607 = vmul.f32 %v606, 0.00024414063
        %v608 = vmul.f32 %v589, %v589
        %v609 = vsub.f32 %v607, %v608
        %v610 = vmax.f32 %v609, 0.0
        %v611 = vsub.f32 %v572, %v589
        %v612 = vsub.f32 %v573, %v589
        %v613 = vsub.f32 %v574, %v589
        %v614 = vsub.f32 %v575, %v589
        %v615 = vadd.f32 %v610, 1e-05
        %v616 = vrsqrt.pop %v615
        %v617 = vmul.f32 %v611, %v616
        %v618 = vmul.f32 %v612, %v616
        %v619 = vmul.f32 %v613, %v616
        %v620 = vmul.f32 %v614, %v616
        %v621 = vmul.f32 %v617, 0.5
        %v622 = vmul.f32 %v618, 0.5
        %v623 = vmul.f32 %v619, 0.5
        %v624 = vmul.f32 %v620, 0.5
        %v625 = vmul.f32 %v617, 0.044715
        %v626 = vmul.f32 %v618, 0.044715
        %v627 = vmul.f32 %v619, 0.044715
        %v628 = vmul.f32 %v620, 0.044715
        %v629 = vmul.f32 %v625, %v617
        %v630 = vmul.f32 %v626, %v618
        %v631 = vmul.f32 %v627, %v619
        %v632 = vmul.f32 %v628, %v620
        %v633 = vmul.f32 %v629, %v617
        %v634 = vmul.f32 %v630, %v618
        %v635 = vmul.f32 %v631, %v619
        %v636 = vmul.f32 %v632, %v620
        %v637 = vadd.f32 %v617, %v633
        %v638 = vadd.f32 %v618, %v634
        %v639 = vadd.f32 %v619, %v635
        %v640 = vadd.f32 %v620, %v636
        %v641 = vmul.f32 %v637, 0.7978846
        %v642 = vmul.f32 %v638, 0.7978846
        %v643 = vmul.f32 %v639, 0.7978846
        %v644 = vmul.f32 %v640, 0.7978846
        %v645 = vtanh.pop %v641
        %v646 = vtanh.pop %v642
        %v647 = vtanh.pop %v643
        %v648 = vtanh.pop %v644
        %v649 = vadd.f32 %v645, 1.0
        %v650 = vadd.f32 %v646, 1.0
        %v651 = vadd.f32 %v647, 1.0
        %v652 = vadd.f32 %v648, 1.0
        %v653 = vmul.f32 %v621, %v649
        %v654 = vmul.f32 %v622, %v650
        %v655 = vmul.f32 %v623, %v651
        %v656 = vmul.f32 %v624, %v652
        %s657 = sld [smem:[#allocation2 + $0x3]]
        %v658 = vstv %s657
        %v659 = vmul.f32 %v336, %v658
        %v660 = vmul.f32 %v337, %v658
        %v661 = vmul.f32 %v338, %v658
        %v662 = vmul.f32 %v339, %v658
        %s663 = sld [smem:[#allocation4 + $0x3]]
        %v664 = vstv %s663
        %v665 = vadd.f32 %v659, %v664
        %v666 = vadd.f32 %v660, %v664
        %v667 = vadd.f32 %v661, %v664
        %v668 = vadd.f32 %v662, %v664
        %s669 = scalar_lea.vmem %s318, 48
        %v670 = vld [vmem:[%s669] sm:$0xf]
        %v671 = vld [vmem:[%s669 + $0x4] sm:$0xf]
        %v672 = vld [vmem:[%s669 + $0x8] sm:$0xf]
        %v673 = vld [vmem:[%s669 + $0xc] sm:$0xf]
        %v674 = vunpack.c.l.bf16 %v670
        %v675 = vunpack.c.l.bf16 %v671
        %v676 = vunpack.c.l.bf16 %v672
        %v677 = vunpack.c.l.bf16 %v673
        %v678 = vadd.f32 %v665, %v674
        %v679 = vadd.f32 %v666, %v675
        %v680 = vadd.f32 %v667, %v676
        %v681 = vadd.f32 %v668, %v677
        %v682 = vadd.f32 %v678, %v679
        %v683 = vadd.f32 %v682, %v680
        %v684 = vadd.f32 %v683, %v681
        %685 = vadd.xlane.f32.xlu0 %v684
        %v686 = vpop.xlane.xlu0 %685
        %v687 = vrot.slane %v686, 4
        %v688 = vadd.f32 %v686, %v687
        %v689 = vrot.slane %v688, 2
        %v690 = vadd.f32 %v688, %v689
        %v691 = vrot.slane %v690, 1
        %v692 = vadd.f32 %v690, %v691
        %s693 = vtos %v692
        %v694 = vstv %s693
        %v695 = vmul.f32 %v694, 0.00024414063
        %v696 = vmul.f32 %v678, %v678
        %v697 = vmul.f32 %v679, %v679
        %v698 = vmul.f32 %v680, %v680
        %v699 = vmul.f32 %v681, %v681
        %v700 = vadd.f32 %v696, %v697
        %v701 = vadd.f32 %v700, %v698
        %v702 = vadd.f32 %v701, %v699
        %703 = vadd.xlane.f32.xlu0 %v702
        %v704 = vpop.xlane.xlu0 %703
        %v705 = vrot.slane %v704, 4
        %v706 = vadd.f32 %v704, %v705
        %v707 = vrot.slane %v706, 2
        %v708 = vadd.f32 %v706, %v707
        %v709 = vrot.slane %v708, 1
        %v710 = vadd.f32 %v708, %v709
        %s711 = vtos %v710
        %v712 = vstv %s711
        %v713 = vmul.f32 %v712, 0.00024414063
        %v714 = vmul.f32 %v695, %v695
        %v715 = vsub.f32 %v713, %v714
        %v716 = vmax.f32 %v715, 0.0
        %v717 = vsub.f32 %v678, %v695
        %v718 = vsub.f32 %v679, %v695
        %v719 = vsub.f32 %v680, %v695
        %v720 = vsub.f32 %v681, %v695
        %v721 = vadd.f32 %v716, 1e-05
        %v722 = vrsqrt.pop %v721
        %v723 = vmul.f32 %v717, %v722
        %v724 = vmul.f32 %v718, %v722
        %v725 = vmul.f32 %v719, %v722
        %v726 = vmul.f32 %v720, %v722
        %v727 = vmul.f32 %v723, 0.5
        %v728 = vmul.f32 %v724, 0.5
        %v729 = vmul.f32 %v725, 0.5
        %v730 = vmul.f32 %v726, 0.5
        %v731 = vmul.f32 %v723, 0.044715
        %v732 = vmul.f32 %v724, 0.044715
        %v733 = vmul.f32 %v725, 0.044715
        %v734 = vmul.f32 %v726, 0.044715
        %v735 = vmul.f32 %v731, %v723
        %v736 = vmul.f32 %v732, %v724
        %v737 = vmul.f32 %v733, %v725
        %v738 = vmul.f32 %v734, %v726
        %v739 = vmul.f32 %v735, %v723
        %v740 = vmul.f32 %v736, %v724
        %v741 = vmul.f32 %v737, %v725
        %v742 = vmul.f32 %v738, %v726
        %v743 = vadd.f32 %v723, %v739
        %v744 = vadd.f32 %v724, %v740
        %v745 = vadd.f32 %v725, %v741
        %v746 = vadd.f32 %v726, %v742
        %v747 = vmul.f32 %v743, 0.7978846
        %v748 = vmul.f32 %v744, 0.7978846
        %v749 = vmul.f32 %v745, 0.7978846
        %v750 = vmul.f32 %v746, 0.7978846
        %v751 = vtanh.pop %v747
        %v752 = vtanh.pop %v748
        %v753 = vtanh.pop %v749
        %v754 = vtanh.pop %v750
        %v755 = vadd.f32 %v751, 1.0
        %v756 = vadd.f32 %v752, 1.0
        %v757 = vadd.f32 %v753, 1.0
        %v758 = vadd.f32 %v754, 1.0
        %v759 = vmul.f32 %v727, %v755
        %v760 = vmul.f32 %v728, %v756
        %v761 = vmul.f32 %v729, %v757
        %v762 = vmul.f32 %v730, %v758
        %s763 = sld [smem:[#allocation6]]
        %v764 = vstv %s763
        %v765 = vmul.f32 %v441, %v764
        %v766 = vmul.f32 %v442, %v764
        %v767 = vmul.f32 %v443, %v764
        %v768 = vmul.f32 %v444, %v764
        %s769 = sld [smem:[#allocation6 + $0x1]]
        %v770 = vstv %s769
        %v771 = vmul.f32 %v547, %v770
        %v772 = vmul.f32 %v548, %v770
        %v773 = vmul.f32 %v549, %v770
        %v774 = vmul.f32 %v550, %v770
        %v775 = vadd.f32 %v765, %v771
        %v776 = vadd.f32 %v766, %v772
        %v777 = vadd.f32 %v767, %v773
        %v778 = vadd.f32 %v768, %v774
        %s779 = sld [smem:[#allocation6 + $0x2]]
        %v780 = vstv %s779
        %v781 = vmul.f32 %v653, %v780
        %v782 = vmul.f32 %v654, %v780
        %v783 = vmul.f32 %v655, %v780
        %v784 = vmul.f32 %v656, %v780
        %v785 = vadd.f32 %v775, %v781
        %v786 = vadd.f32 %v776, %v782
        %v787 = vadd.f32 %v777, %v783
        %v788 = vadd.f32 %v778, %v784
        %s789 = sld [smem:[#allocation6 + $0x3]]
        %v790 = vstv %s789
        %v791 = vmul.f32 %v759, %v790
        %v792 = vmul.f32 %v760, %v790
        %v793 = vmul.f32 %v761, %v790
        %v794 = vmul.f32 %v762, %v790
        %v795 = vadd.f32 %v785, %v791
        %v796 = vadd.f32 %v786, %v792
        %v797 = vadd.f32 %v787, %v793
        %v798 = vadd.f32 %v788, %v794
        %s799 = sld [smem:[#allocation7]]
        %v800 = vstv %s799
        %v801 = vadd.f32 %v795, %v800
        %v802 = vadd.f32 %v796, %v800
        %v803 = vadd.f32 %v797, %v800
        %v804 = vadd.f32 %v798, %v800
        %v805 = vadd.f32 %v801, %v802
        %v806 = vadd.f32 %v805, %v803
        %v807 = vadd.f32 %v806, %v804
        %808 = vadd.xlane.f32.xlu0 %v807
        %v809 = vpop.xlane.xlu0 %808
        %v810 = vrot.slane %v809, 4
        %v811 = vadd.f32 %v809, %v810
        %v812 = vrot.slane %v811, 2
        %v813 = vadd.f32 %v811, %v812
        %v814 = vrot.slane %v813, 1
        %v815 = vadd.f32 %v813, %v814
        %s816 = vtos %v815
        %v817 = vstv %s816
        %v818 = vmul.f32 %v817, 0.00024414063
        %v819 = vmul.f32 %v801, %v801
        %v820 = vmul.f32 %v802, %v802
        %v821 = vmul.f32 %v803, %v803
        %v822 = vmul.f32 %v804, %v804
        %v823 = vadd.f32 %v819, %v820
        %v824 = vadd.f32 %v823, %v821
        %v825 = vadd.f32 %v824, %v822
        %826 = vadd.xlane.f32.xlu0 %v825
        %v827 = vpop.xlane.xlu0 %826
        %v828 = vrot.slane %v827, 4
        %v829 = vadd.f32 %v827, %v828
        %v830 = vrot.slane %v829, 2
        %v831 = vadd.f32 %v829, %v830
        %v832 = vrot.slane %v831, 1
        %v833 = vadd.f32 %v831, %v832
        %s834 = vtos %v833
        %v835 = vstv %s834
        %v836 = vmul.f32 %v835, 0.00024414063
        %v837 = vmul.f32 %v818, %v818
        %v838 = vsub.f32 %v836, %v837
        %v839 = vmax.f32 %v838, 0.0
        %v840 = vsub.f32 %v801, %v818
        %v841 = vsub.f32 %v802, %v818
        %v842 = vsub.f32 %v803, %v818
        %v843 = vsub.f32 %v804, %v818
        %v844 = vadd.f32 %v839, 1e-05
        %v845 = vrsqrt.pop %v844
        %v846 = vmul.f32 %v840, %v845
        %v847 = vmul.f32 %v841, %v845
        %v848 = vmul.f32 %v842, %v845
        %v849 = vmul.f32 %v843, %v845
        %v850 = vmul.f32 %v846, 0.5
        %v851 = vmul.f32 %v847, 0.5
        %v852 = vmul.f32 %v848, 0.5
        %v853 = vmul.f32 %v849, 0.5
        %v854 = vmul.f32 %v846, 0.044715
        %v855 = vmul.f32 %v847, 0.044715
        %v856 = vmul.f32 %v848, 0.044715
        %v857 = vmul.f32 %v849, 0.044715
        %v858 = vmul.f32 %v854, %v846
        %v859 = vmul.f32 %v855, %v847
        %v860 = vmul.f32 %v856, %v848
        %v861 = vmul.f32 %v857, %v849
        %v862 = vmul.f32 %v858, %v846
        %v863 = vmul.f32 %v859, %v847
        %v864 = vmul.f32 %v860, %v848
        %v865 = vmul.f32 %v861, %v849
        %v866 = vadd.f32 %v846, %v862
        %v867 = vadd.f32 %v847, %v863
        %v868 = vadd.f32 %v848, %v864
        %v869 = vadd.f32 %v849, %v865
        %v870 = vmul.f32 %v866, 0.7978846
        %v871 = vmul.f32 %v867, 0.7978846
        %v872 = vmul.f32 %v868, 0.7978846
        %v873 = vmul.f32 %v869, 0.7978846
        %v874 = vtanh.pop %v870
        %v875 = vtanh.pop %v871
        %v876 = vtanh.pop %v872
        %v877 = vtanh.pop %v873
        %v878 = vadd.f32 %v874, 1.0
        %v879 = vadd.f32 %v875, 1.0
        %v880 = vadd.f32 %v876, 1.0
        %v881 = vadd.f32 %v877, 1.0
        %v882 = vmul.f32 %v850, %v878
        %v883 = vmul.f32 %v851, %v879
        %v884 = vmul.f32 %v852, %v880
        %v885 = vmul.f32 %v853, %v881
        %886 = vst [vmem:[%s323] sm:$0xff] %v882
        %887 = vst [vmem:[%s323 + $0x8] sm:$0xff] %v883
        %888 = vst [vmem:[%s323 + $0x10] sm:$0xff] %v884
        %889 = vst [vmem:[%s323 + $0x18] sm:$0xff] %v885
        %s890 = sld [smem:[#allocation6 + $0x80]]
        %v891 = vstv %s890
        %v892 = vmul.f32 %v441, %v891
        %v893 = vmul.f32 %v442, %v891
        %v894 = vmul.f32 %v443, %v891
        %v895 = vmul.f32 %v444, %v891
        %s896 = sld [smem:[#allocation6 + $0x81]]
        %v897 = vstv %s896
        %v898 = vmul.f32 %v547, %v897
        %v899 = vmul.f32 %v548, %v897
        %v900 = vmul.f32 %v549, %v897
        %v901 = vmul.f32 %v550, %v897
        %v902 = vadd.f32 %v892, %v898
        %v903 = vadd.f32 %v893, %v899
        %v904 = vadd.f32 %v894, %v900
        %v905 = vadd.f32 %v895, %v901
        %s906 = sld [smem:[#allocation6 + $0x82]]
        %v907 = vstv %s906
        %v908 = vmul.f32 %v653, %v907
        %v909 = vmul.f32 %v654, %v907
        %v910 = vmul.f32 %v655, %v907
        %v911 = vmul.f32 %v656, %v907
        %v912 = vadd.f32 %v902, %v908
        %v913 = vadd.f32 %v903, %v909
        %v914 = vadd.f32 %v904, %v910
        %v915 = vadd.f32 %v905, %v911
        %s916 = sld [smem:[#allocation6 + $0x83]]
        %v917 = vstv %s916
        %v918 = vmul.f32 %v759, %v917
        %v919 = vmul.f32 %v760, %v917
        %v920 = vmul.f32 %v761, %v917
        %v921 = vmul.f32 %v762, %v917
        %v922 = vadd.f32 %v912, %v918
        %v923 = vadd.f32 %v913, %v919
        %v924 = vadd.f32 %v914, %v920
        %v925 = vadd.f32 %v915, %v921
        %s926 = sld [smem:[#allocation7 + $0x1]]
        %v927 = vstv %s926
        %v928 = vadd.f32 %v922, %v927
        %v929 = vadd.f32 %v923, %v927
        %v930 = vadd.f32 %v924, %v927
        %v931 = vadd.f32 %v925, %v927
        %v932 = vadd.f32 %v928, %v929
        %v933 = vadd.f32 %v932, %v930
        %v934 = vadd.f32 %v933, %v931
        %935 = vadd.xlane.f32.xlu0 %v934
        %v936 = vpop.xlane.xlu0 %935
        %v937 = vrot.slane %v936, 4
        %v938 = vadd.f32 %v936, %v937
        %v939 = vrot.slane %v938, 2
        %v940 = vadd.f32 %v938, %v939
        %v941 = vrot.slane %v940, 1
        %v942 = vadd.f32 %v940, %v941
        %s943 = vtos %v942
        %v944 = vstv %s943
        %v945 = vmul.f32 %v944, 0.00024414063
        %v946 = vmul.f32 %v928, %v928
        %v947 = vmul.f32 %v929, %v929
        %v948 = vmul.f32 %v930, %v930
        %v949 = vmul.f32 %v931, %v931
        %v950 = vadd.f32 %v946, %v947
        %v951 = vadd.f32 %v950, %v948
        %v952 = vadd.f32 %v951, %v949
        %953 = vadd.xlane.f32.xlu0 %v952
        %v954 = vpop.xlane.xlu0 %953
        %v955 = vrot.slane %v954, 4
        %v956 = vadd.f32 %v954, %v955
        %v957 = vrot.slane %v956, 2
        %v958 = vadd.f32 %v956, %v957
        %v959 = vrot.slane %v958, 1
        %v960 = vadd.f32 %v958, %v959
        %s961 = vtos %v960
        %v962 = vstv %s961
        %v963 = vmul.f32 %v962, 0.00024414063
        %v964 = vmul.f32 %v945, %v945
        %v965 = vsub.f32 %v963, %v964
        %v966 = vmax.f32 %v965, 0.0
        %v967 = vsub.f32 %v928, %v945
        %v968 = vsub.f32 %v929, %v945
        %v969 = vsub.f32 %v930, %v945
        %v970 = vsub.f32 %v931, %v945
        %v971 = vadd.f32 %v966, 1e-05
        %v972 = vrsqrt.pop %v971
        %v973 = vmul.f32 %v967, %v972
        %v974 = vmul.f32 %v968, %v972
        %v975 = vmul.f32 %v969, %v972
        %v976 = vmul.f32 %v970, %v972
        %v977 = vmul.f32 %v973, 0.5
        %v978 = vmul.f32 %v974, 0.5
        %v979 = vmul.f32 %v975, 0.5
        %v980 = vmul.f32 %v976, 0.5
        %v981 = vmul.f32 %v973, 0.044715
        %v982 = vmul.f32 %v974, 0.044715
        %v983 = vmul.f32 %v975, 0.044715
        %v984 = vmul.f32 %v976, 0.044715
        %v985 = vmul.f32 %v981, %v973
        %v986 = vmul.f32 %v982, %v974
        %v987 = vmul.f32 %v983, %v975
        %v988 = vmul.f32 %v984, %v976
        %v989 = vmul.f32 %v985, %v973
        %v990 = vmul.f32 %v986, %v974
        %v991 = vmul.f32 %v987, %v975
        %v992 = vmul.f32 %v988, %v976
        %v993 = vadd.f32 %v973, %v989
        %v994 = vadd.f32 %v974, %v990
        %v995 = vadd.f32 %v975, %v991
        %v996 = vadd.f32 %v976, %v992
        %v997 = vmul.f32 %v993, 0.7978846
        %v998 = vmul.f32 %v994, 0.7978846
        %v999 = vmul.f32 %v995, 0.7978846
        %v1000 = vmul.f32 %v996, 0.7978846
        %v1001 = vtanh.pop %v997
        %v1002 = vtanh.pop %v998
        %v1003 = vtanh.pop %v999
        %v1004 = vtanh.pop %v1000
        %v1005 = vadd.f32 %v1001, 1.0
        %v1006 = vadd.f32 %v1002, 1.0
        %v1007 = vadd.f32 %v1003, 1.0
        %v1008 = vadd.f32 %v1004, 1.0
        %v1009 = vmul.f32 %v977, %v1005
        %v1010 = vmul.f32 %v978, %v1006
        %v1011 = vmul.f32 %v979, %v1007
        %v1012 = vmul.f32 %v980, %v1008
        %s1013 = scalar_lea.vmem %s323, 32
        %1014 = vst [vmem:[%s1013] sm:$0xff] %v1009
        %1015 = vst [vmem:[%s1013 + $0x8] sm:$0xff] %v1010
        %1016 = vst [vmem:[%s1013 + $0x10] sm:$0xff] %v1011
        %1017 = vst [vmem:[%s1013 + $0x18] sm:$0xff] %v1012
        %p1018 = scmp.lt.s32.totalorder %s20, 1
        %s1019 = scalar_select %p1018, %s20, 1
        %s1020 = smul.addr %s1019, 8
        %s1021 = smul.addr %s1020, 8
        %s1022 = scalar_lea.vmem %s6, %s1021
        // Predicated region
        $region61: #{fourier_block_forward.3} parent=43 // pred_check
          %p1023 = pneg %p174
        $region62: #{fourier_block_forward.3} parent=43 // pred_check_branch
          %1025 = sbr.rel (%p1023) target = $region64
        $region63: #{fourier_block_forward.3} parent=43 // pred_region
          _
        $region64: #{fourier_block_forward.3} parent=43 // pred_fallthru
          _
      $region44: #{fourier_block_forward.3} parent=5 // pred_fallthru
        _
      %p1026 = scmp.le.s32.totalorder 2, %s15
      // Predicated region
      $region65: #{fourier_block_forward.3} parent=5 // pred_check
        %p1027 = pneg %p1026
      $region66: #{fourier_block_forward.3} parent=5 // pred_check_branch
        %1029 = sbr.rel (%p1027) target = $region68
      $region67: #{fourier_block_forward.3} parent=5 // pred_region
        %s1030 = ssub.s32 %s15, 2
        // Predicated region
        $region69: #{fourier_block_forward.3} parent=67 // pred_check
          %p1031 = pneg %p180
        $region70: #{fourier_block_forward.3} parent=67 // pred_check_branch
          %1033 = sbr.rel (%p1031) target = $region72
        $region71: #{fourier_block_forward.3} parent=67 // pred_region
          %p1034 = scmp.lt.s32.totalorder %s21, 1
          %s1035 = scalar_select %p1034, %s21, 1
          %s1036 = smul.addr %s1035, 8
          %s1037 = smul.addr %s1036, 8
          %s1038 = scalar_lea.vmem %s6, %s1037
        $region72: #{fourier_block_forward.3} parent=67 // pred_fallthru
          _
      $region68: #{fourier_block_forward.3} parent=5 // pred_fallthru
        _
    $region6: #{fourier_block_forward.3} parent=1 // loop_footer
      %s19 = sadd.s32 1, %s15
    $region7: #{fourier_block_forward.3} parent=1 // loop_footer_branch
      %14 = sbr.rel target = $region3
    $region8: #{fourier_block_forward.3} parent=1 // loop_exit
      _
    %1039 = vsyncpa [#allocation3], 1
    %s1040 = scalar_lea.sflag [#allocation3], 1
    %1041 = vsyncpa %s1040, 1
    %1042 = vsyncpa [#allocation5], 1
    %1043 = vsyncpa [#allocation8], 1

</llo_original>
